<compile_context>
chip_gen: v6e
topology: v6e:2x2x1
jax: 0.10.0
libtpu: 0.0.40
codegen_flags: <defaults>
</compile_context>

<pallas_src>
import jax
import jax.numpy as jnp
import numpy as np
from jax.experimental import pallas as pl
from jax.experimental.pallas import tpu as pltpu


def _fpn_block_kernel(x_ref, skip_ref, g_ref, w_ref, b_ref, o_ref):
    # x_ref   : (1, Cp, TH*W)     VMEM  pyramid tile, rows flattened onto lanes
    # skip_ref: (1, Cs, 4*TH*W)   VMEM  skip tile (2TH x 2W flattened onto lanes)
    # g_ref   : (TH*W, 4*TH*W)    VMEM  resident 0/1 nearest-upsample matrix
    # w_ref   : (Cp, Cs)          VMEM  1x1 conv weight (MXU operand)
    # b_ref   : (Cp, 1)           VMEM  bias (f32)
    # o_ref   : (1, Cp, 4*TH*W)   VMEM  output tile (lane-dense)
    up = jnp.dot(x_ref[0], g_ref[...], preferred_element_type=jnp.float32)
    conv = jnp.dot(w_ref[...], skip_ref[0], preferred_element_type=jnp.float32)
    o_ref[0] = (up + conv + b_ref[...]).astype(o_ref.dtype)


def _vmem_capacity_bytes():
    try:
        return int(pltpu.get_tpu_info().vmem_capacity_bytes)
    except Exception:
        return 64 * 2**20          # conservative (true for v7x; under-counts v5e/v6e)


def _pick_row_tile(N, H, W, Cp, Cs, in_itemsize, g_itemsize, vmem_budget,
                   max_tile_elems=256, min_steps=8):
    """Pick the x-row tile TH.

    Legality: TH | H and (TH == H or (TH*W) % 128 == 0) so every block's lane
    dim is either the full extent or a multiple of 128 (lane tiling is 128 for
    every dtype; sublane dims are the full channel extents, so bf16/int8
    packing imposes no extra constraint in this layout).
    Preference order: fits the VMEM budget -> TH*W <= max_tile_elems (keeps
    the upsample matmul under the HBM roofline on all generations) ->
    >= min(min_steps, achievable) grid steps -> largest tile.
    """
    legal = [t for t in range(H, 0, -1)
             if H % t == 0 and (t == H or (t * W) % 128 == 0)]

    def vmem_bytes(t):
        tw = t * W
        data = 2 * (Cp * tw + 4 * Cs * tw + 4 * Cp * tw) * in_itemsize  # x/skip/out, dbl-buffered
        g = 2 * tw * 4 * tw * g_itemsize                                # Gup (assume 2 bufs)
        wb = 2 * (Cp * Cs * in_itemsize + Cp * 4)                       # weight + bias
        acc = 2 * Cp * 4 * tw * 4                                       # f32 matmul results
        return data + g + wb + acc

    fitting = [t for t in legal if vmem_bytes(t) <= vmem_budget]
    pool = fitting if fitting else [min(legal)]
    capped = [t for t in pool if t * W <= max_tile_elems]
    pool = capped if capped else [min(pool)]
    best_steps = max(N * (H // t) for t in pool)
    target = min(min_steps, best_steps)
    pool = [t for t in pool if N * (H // t) >= target]
    return max(pool)


def fpn_block(x_nchw, skip_nchw, w_oi, b, *, max_tile_elems=256):
    """x_nchw: (N, Cp, H, W); skip_nchw: (N, Cs, 2H, 2W); w_oi: (Cp, Cs); b: (Cp,)."""
    N, Cp, H, W = x_nchw.shape
    Ns, Cs, H2, W2 = skip_nchw.shape
    assert Ns == N and H2 == 2 * H and W2 == 2 * W
    assert w_oi.shape == (Cp, Cs) and b.shape == (Cp,)

    in_dtype = x_nchw.dtype
    # Gup is a 0/1 matrix and both matmuls accumulate in f32, so bf16 operands
    # are exact for bf16 inputs; keep f32 operands for f32 inputs.
    g_dtype = jnp.bfloat16 if in_dtype == jnp.bfloat16 else jnp.float32
    itemsize = jnp.dtype(in_dtype).itemsize
    g_itemsize = jnp.dtype(g_dtype).itemsize

    vmem_cap = _vmem_capacity_bytes()
    vmem_budget = int(0.60 * vmem_cap)       # tiling budget (~38 MiB v7x, ~77 MiB v5e/v6e)
    vmem_limit = int(0.75 * vmem_cap)        # scoped VMEM limit handed to the compiler

    TH = _pick_row_tile(N, H, W, Cp, Cs, itemsize, g_itemsize, vmem_budget,
                        max_tile_elems=max_tile_elems)
    TW = TH * W
    TW4 = 4 * TW
    grid = (N, H // TH)

    # Loop-invariant 0/1 nearest-upsample matrix, built once on the host:
    #   gup[t*W + w, r2*(2W) + w2] = (t == r2 // 2) & (w == w2 // 2)
    t_i = np.arange(TH)
    w_i = np.arange(W)
    r2_i = np.arange(2 * TH)
    w2_i = np.arange(2 * W)
    mask = ((t_i[:, None, None, None] == (r2_i[None, None, :, None] // 2)) &
            (w_i[None, :, None, None] == (w2_i[None, None, None, :] // 2)))
    gup = jnp.asarray(mask.reshape(TW, TW4).astype(np.float32), dtype=g_dtype)

    # Free row-major reshapes (no HBM traffic): spatial goes onto the lane dim.
    x_flat = x_nchw.reshape(N, Cp, H * W)
    skip_flat = skip_nchw.reshape(N, Cs, H2 * W2)
    w_cast = w_oi.astype(skip_flat.dtype)
    b_col = b.astype(jnp.float32).reshape(Cp, 1)

    def run(single_buffer_resident):
        def res_spec(shp):
            zero_map = lambda n, r, _rank=len(shp): (0,) * _rank
            if single_buffer_resident:
                return pl.BlockSpec(shp, zero_map, pipeline_mode=pl.Buffered(1))
            return pl.BlockSpec(shp, zero_map)

        return pl.pallas_call(
            _fpn_block_kernel,
            out_shape=jax.ShapeDtypeStruct((N, Cp, H2 * W2), in_dtype),
            grid_spec=pltpu.PrefetchScalarGridSpec(
                num_scalar_prefetch=0,
                grid=grid,
                in_specs=[
                    pl.BlockSpec((1, Cp, TW), lambda n, r: (n, 0, r)),     # x rows [r*TH,(r+1)*TH)
                    pl.BlockSpec((1, Cs, TW4), lambda n, r: (n, 0, r)),    # skip rows [2r*TH, 2(r+1)*TH)
                    res_spec((TW, TW4)),                                   # Gup  (resident)
                    res_spec((Cp, Cs)),                                    # w    (resident)
                    res_spec((Cp, 1)),                                     # b    (resident)
                ],
                out_specs=pl.BlockSpec((1, Cp, TW4), lambda n, r: (n, 0, r)),
            ),
            compiler_params=pltpu.CompilerParams(
                dimension_semantics=("parallel", "parallel"),
                vmem_limit_bytes=vmem_limit),
        )(x_flat, skip_flat, gup, w_cast, b_col)

    try:
        out_flat = run(True)          # single-buffered resident operands
    except Exception:
        out_flat = run(False)         # fallback: default double-buffering
    return out_flat.reshape(N, Cp, H2, W2)


def _reference(x_nchw, skip_nchw, w_oi, b):
    # Pure-JAX reference matching the PyTorch forward exactly.
    up = jnp.repeat(jnp.repeat(x_nchw, 2, axis=2), 2, axis=3)
    conv = jnp.einsum('nchw,oc->nohw', skip_nchw, w_oi) + b[None, :, None, None]
    return up + conv


if __name__ == "__main__":
    # Small deterministic shapes consistent with the module:
    #   pyramid_channels = 16, skip_channels = 8, batch = 2,
    #   x spatial 16x16 -> skip/out spatial 32x32.
    N, Cp, Cs, H, W = 2, 16, 8, 16, 16

    key = jax.random.PRNGKey(0)
    kx, ks, kw, kb = jax.random.split(key, 4)
    x = jax.random.normal(kx, (N, Cp, H, W), jnp.float32)
    skip = jax.random.normal(ks, (N, Cs, 2 * H, 2 * W), jnp.float32)
    # Deterministic synthetic Conv2d(Cs, Cp, kernel_size=1) parameters
    # ((Cp, Cs, 1, 1) weight squeezed to (Cp, Cs)).
    w = jax.random.normal(kw, (Cp, Cs), jnp.float32) * 0.1
    b = jax.random.normal(kb, (Cp,), jnp.float32) * 0.1

    out = jax.block_until_ready(fpn_block(x, skip, w, b))
    ref = _reference(x, skip, w, b)
    assert out.shape == (N, Cp, 2 * H, 2 * W), out.shape
    err = float(jnp.max(jnp.abs(out - ref)))
    assert jnp.allclose(out, ref, rtol=1e-3, atol=1e-3), err

    print("KERNEL_OK")
</pallas_src>

<mosaic_0001>
module attributes {stable_mosaic.version = 11 : i64} {
  func.func @_fpn_block_kernel(%arg0: i32, %arg1: i32, %arg2: memref<1x16x128xf32, #tpu.memory_space<vmem>>, %arg3: memref<1x8x512xf32, #tpu.memory_space<vmem>>, %arg4: memref<128x512xf32, #tpu.memory_space<vmem>>, %arg5: memref<16x8xf32, #tpu.memory_space<vmem>>, %arg6: memref<16x1xf32, #tpu.memory_space<vmem>>, %arg7: memref<1x16x512xf32, #tpu.memory_space<vmem>>) attributes {dimension_semantics = [#tpu.dimension_semantics<parallel>, #tpu.dimension_semantics<parallel>], iteration_bounds = array<i64: 2, 2>, scalar_prefetch = 0 : i64, scratch_operands = 0 : i64, tpu.core_type = #tpu.core_type<tc>, window_params = [{transform_indices = @transform_0, window_bounds = array<i64: 1, 16, 128>}, {transform_indices = @transform_1, window_bounds = array<i64: 1, 8, 512>}, {pipeline_mode = #tpu.pipeline_mode<synchronous>, transform_indices = @transform_2, window_bounds = array<i64: 128, 512>}, {pipeline_mode = #tpu.pipeline_mode<synchronous>, transform_indices = @transform_3, window_bounds = array<i64: 16, 8>}, {pipeline_mode = #tpu.pipeline_mode<synchronous>, transform_indices = @transform_4, window_bounds = array<i64: 16, 1>}, {transform_indices = @transform_5, window_bounds = array<i64: 1, 16, 512>}]} {
    %c0 = arith.constant 0 : index
    %c0_0 = arith.constant 0 : index
    %c0_1 = arith.constant 0 : index
    %0 = vector.load %arg2[%c0, %c0_0, %c0_1] : memref<1x16x128xf32, #tpu.memory_space<vmem>>, vector<1x16x128xf32>
    %1 = vector.shape_cast %0 : vector<1x16x128xf32> to vector<16x128xf32>
    %c0_2 = arith.constant 0 : index
    %c0_3 = arith.constant 0 : index
    %2 = vector.load %arg4[%c0_2, %c0_3] : memref<128x512xf32, #tpu.memory_space<vmem>>, vector<128x512xf32>
    %cst = arith.constant dense<0.000000e+00> : vector<16x512xf32>
    %3 = tpu.matmul %1, %2, %cst {dimension_numbers = #tpu.dot_dimension_numbers<[1], [0], [0], [1], [0, 0, 1, 1], [], []>} : vector<16x128xf32>, vector<128x512xf32>, vector<16x512xf32> -> vector<16x512xf32>
    %c0_4 = arith.constant 0 : index
    %c0_5 = arith.constant 0 : index
    %4 = vector.load %arg5[%c0_4, %c0_5] : memref<16x8xf32, #tpu.memory_space<vmem>>, vector<16x8xf32>
    %c0_6 = arith.constant 0 : index
    %c0_7 = arith.constant 0 : index
    %c0_8 = arith.constant 0 : index
    %5 = vector.load %arg3[%c0_6, %c0_7, %c0_8] : memref<1x8x512xf32, #tpu.memory_space<vmem>>, vector<1x8x512xf32>
    %6 = vector.shape_cast %5 : vector<1x8x512xf32> to vector<8x512xf32>
    %cst_9 = arith.constant dense<0.000000e+00> : vector<16x512xf32>
    %7 = tpu.matmul %4, %6, %cst_9 {dimension_numbers = #tpu.dot_dimension_numbers<[1], [0], [0], [1], [0, 0, 1, 1], [], []>} : vector<16x8xf32>, vector<8x512xf32>, vector<16x512xf32> -> vector<16x512xf32>
    %8 = arith.addf %3, %7 : vector<16x512xf32>
    %c0_10 = arith.constant 0 : index
    %c0_11 = arith.constant 0 : index
    %9 = vector.load %arg6[%c0_10, %c0_11] : memref<16x1xf32, #tpu.memory_space<vmem>>, vector<16x1xf32>
    %10 = vector.broadcast %9 : vector<16x1xf32> to vector<16x512xf32>
    %11 = arith.addf %8, %10 : vector<16x512xf32>
    %c0_12 = arith.constant 0 : index
    %c0_13 = arith.constant 0 : index
    %c0_14 = arith.constant 0 : index
    %12 = vector.load %arg7[%c0_12, %c0_13, %c0_14] : memref<1x16x512xf32, #tpu.memory_space<vmem>>, vector<1x16x512xf32>
    %13 = vector.shape_cast %12 : vector<1x16x512xf32> to vector<16x512xf32>
    %14 = vector.shape_cast %11 : vector<16x512xf32> to vector<1x16x512xf32>
    tpu.vector_store %arg7[%c0_12, %c0_13, %c0_14], %14 {strides = array<i32>} : memref<1x16x512xf32, #tpu.memory_space<vmem>>, vector<1x16x512xf32>,
    return
  }
  func.func @transform_0(%arg0: i32, %arg1: i32) -> (i32, i32, i32) {
    %c0_i32 = arith.constant 0 : i32
    %c0_i32_0 = arith.constant 0 : i32
    return %arg0, %c0_i32, %arg1 : i32, i32, i32
  }
  func.func @transform_1(%arg0: i32, %arg1: i32) -> (i32, i32, i32) {
    %c0_i32 = arith.constant 0 : i32
    %c0_i32_0 = arith.constant 0 : i32
    return %arg0, %c0_i32, %arg1 : i32, i32, i32
  }
  func.func @transform_2(%arg0: i32, %arg1: i32) -> (i32, i32) {
    %c0_i32 = arith.constant 0 : i32
    %c0_i32_0 = arith.constant 0 : i32
    %c0_i32_1 = arith.constant 0 : i32
    return %c0_i32, %c0_i32_0 : i32, i32
  }
  func.func @transform_3(%arg0: i32, %arg1: i32) -> (i32, i32) {
    %c0_i32 = arith.constant 0 : i32
    %c0_i32_0 = arith.constant 0 : i32
    %c0_i32_1 = arith.constant 0 : i32
    return %c0_i32, %c0_i32_0 : i32, i32
  }
  func.func @transform_4(%arg0: i32, %arg1: i32) -> (i32, i32) {
    %c0_i32 = arith.constant 0 : i32
    %c0_i32_0 = arith.constant 0 : i32
    %c0_i32_1 = arith.constant 0 : i32
    return %c0_i32, %c0_i32_0 : i32, i32
  }
  func.func @transform_5(%arg0: i32, %arg1: i32) -> (i32, i32, i32) {
    %c0_i32 = arith.constant 0 : i32
    %c0_i32_0 = arith.constant 0 : i32
    return %arg0, %c0_i32, %arg1 : i32, i32, i32
  }
}

module attributes {stable_mosaic.version = 11 : i64} {
  func.func @_fpn_block_kernel(%arg0: i32, %arg1: i32, %arg2: memref<1x16x128xf32, #tpu.memory_space<vmem>>, %arg3: memref<1x8x512xf32, #tpu.memory_space<vmem>>, %arg4: memref<128x512xf32, #tpu.memory_space<vmem>>, %arg5: memref<16x8xf32, #tpu.memory_space<vmem>>, %arg6: memref<16x1xf32, #tpu.memory_space<vmem>>, %arg7: memref<1x16x512xf32, #tpu.memory_space<vmem>>) attributes {dimension_semantics = [#tpu.dimension_semantics<parallel>, #tpu.dimension_semantics<parallel>], iteration_bounds = array<i64: 2, 2>, scalar_prefetch = 0 : i64, scratch_operands = 0 : i64, tpu.core_type = #tpu.core_type<tc>, window_params = [{transform_indices = @transform_0, window_bounds = array<i64: 1, 16, 128>}, {transform_indices = @transform_1, window_bounds = array<i64: 1, 8, 512>}, {pipeline_mode = #tpu.pipeline_mode<synchronous>, transform_indices = @transform_2, window_bounds = array<i64: 128, 512>}, {pipeline_mode = #tpu.pipeline_mode<synchronous>, transform_indices = @transform_3, window_bounds = array<i64: 16, 8>}, {pipeline_mode = #tpu.pipeline_mode<synchronous>, transform_indices = @transform_4, window_bounds = array<i64: 16, 1>}, {transform_indices = @transform_5, window_bounds = array<i64: 1, 16, 512>}]} {
    %c0 = arith.constant 0 : index
    %c0_0 = arith.constant 0 : index
    %c0_1 = arith.constant 0 : index
    %0 = vector.load %arg2[%c0, %c0_0, %c0_1] : memref<1x16x128xf32, #tpu.memory_space<vmem>>, vector<1x16x128xf32>
    %1 = vector.shape_cast %0 : vector<1x16x128xf32> to vector<16x128xf32>
    %c0_2 = arith.constant 0 : index
    %c0_3 = arith.constant 0 : index
    %2 = vector.load %arg4[%c0_2, %c0_3] : memref<128x512xf32, #tpu.memory_space<vmem>>, vector<128x512xf32>
    %cst = arith.constant dense<0.000000e+00> : vector<16x512xf32>
    %3 = tpu.matmul %1, %2, %cst {dimension_numbers = #tpu.dot_dimension_numbers<[1], [0], [0], [1], [0, 0, 1, 1], [], []>} : vector<16x128xf32>, vector<128x512xf32>, vector<16x512xf32> -> vector<16x512xf32>
    %c0_4 = arith.constant 0 : index
    %c0_5 = arith.constant 0 : index
    %4 = vector.load %arg5[%c0_4, %c0_5] : memref<16x8xf32, #tpu.memory_space<vmem>>, vector<16x8xf32>
    %c0_6 = arith.constant 0 : index
    %c0_7 = arith.constant 0 : index
    %c0_8 = arith.constant 0 : index
    %5 = vector.load %arg3[%c0_6, %c0_7, %c0_8] : memref<1x8x512xf32, #tpu.memory_space<vmem>>, vector<1x8x512xf32>
    %6 = vector.shape_cast %5 : vector<1x8x512xf32> to vector<8x512xf32>
    %cst_9 = arith.constant dense<0.000000e+00> : vector<16x512xf32>
    %7 = tpu.matmul %4, %6, %cst_9 {dimension_numbers = #tpu.dot_dimension_numbers<[1], [0], [0], [1], [0, 0, 1, 1], [], []>} : vector<16x8xf32>, vector<8x512xf32>, vector<16x512xf32> -> vector<16x512xf32>
    %8 = arith.addf %3, %7 : vector<16x512xf32>
    %c0_10 = arith.constant 0 : index
    %c0_11 = arith.constant 0 : index
    %9 = vector.load %arg6[%c0_10, %c0_11] : memref<16x1xf32, #tpu.memory_space<vmem>>, vector<16x1xf32>
    %10 = vector.broadcast %9 : vector<16x1xf32> to vector<16x512xf32>
    %11 = arith.addf %8, %10 : vector<16x512xf32>
    %c0_12 = arith.constant 0 : index
    %c0_13 = arith.constant 0 : index
    %c0_14 = arith.constant 0 : index
    %12 = vector.load %arg7[%c0_12, %c0_13, %c0_14] : memref<1x16x512xf32, #tpu.memory_space<vmem>>, vector<1x16x512xf32>
    %13 = vector.shape_cast %12 : vector<1x16x512xf32> to vector<16x512xf32>
    %14 = vector.shape_cast %11 : vector<16x512xf32> to vector<1x16x512xf32>
    tpu.vector_store %arg7[%c0_12, %c0_13, %c0_14], %14 {strides = array<i32>} : memref<1x16x512xf32, #tpu.memory_space<vmem>>, vector<1x16x512xf32>,
    return
  }
  func.func @transform_0(%arg0: i32, %arg1: i32) -> (i32, i32, i32) {
    %c0_i32 = arith.constant 0 : i32
    %c0_i32_0 = arith.constant 0 : i32
    return %arg0, %c0_i32, %arg1 : i32, i32, i32
  }
  func.func @transform_1(%arg0: i32, %arg1: i32) -> (i32, i32, i32) {
    %c0_i32 = arith.constant 0 : i32
    %c0_i32_0 = arith.constant 0 : i32
    return %arg0, %c0_i32, %arg1 : i32, i32, i32
  }
  func.func @transform_2(%arg0: i32, %arg1: i32) -> (i32, i32) {
    %c0_i32 = arith.constant 0 : i32
    %c0_i32_0 = arith.constant 0 : i32
    %c0_i32_1 = arith.constant 0 : i32
    return %c0_i32, %c0_i32_0 : i32, i32
  }
  func.func @transform_3(%arg0: i32, %arg1: i32) -> (i32, i32) {
    %c0_i32 = arith.constant 0 : i32
    %c0_i32_0 = arith.constant 0 : i32
    %c0_i32_1 = arith.constant 0 : i32
    return %c0_i32, %c0_i32_0 : i32, i32
  }
  func.func @transform_4(%arg0: i32, %arg1: i32) -> (i32, i32) {
    %c0_i32 = arith.constant 0 : i32
    %c0_i32_0 = arith.constant 0 : i32
    %c0_i32_1 = arith.constant 0 : i32
    return %c0_i32, %c0_i32_0 : i32, i32
  }
  func.func @transform_5(%arg0: i32, %arg1: i32) -> (i32, i32, i32) {
    %c0_i32 = arith.constant 0 : i32
    %c0_i32_0 = arith.constant 0 : i32
    return %arg0, %c0_i32, %arg1 : i32, i32, i32
  }
}

</mosaic_0001>

<llo_original>
// kernel: tpu_custom_call.1
$region0: #{tpu_custom_call.1}
  #allocation0 [shape = 'u32[]', space=smem, size = 0x4, offset = 0x4, fixed_abs, tag = 'smem constant byte address 0x4 - core index']
  #allocation1 [shape = 'u32[144,128]{1,0:T(1,128)}', space=vmem, size = 0x12000, scoped, tag = 'internal scratch']
  %s0 = inlined_call_operand.hbm [shape: f32[2,16,256], index: 0, kind: input, shape index: {}]
  %s1 = inlined_call_operand.hbm [shape: f32[2,8,1024], index: 1, kind: input, shape index: {}]
  %s2 = inlined_call_operand.hbm [shape: f32[128,512], index: 2, kind: input, shape index: {}]
  %s3 = inlined_call_operand.vmem [shape: f32[16,8], index: 3, kind: input, shape index: {}]
  %s4 = inlined_call_operand.vmem [shape: f32[16,1], index: 4, kind: input, shape index: {}]
  %s5 = inlined_call_operand.hbm [shape: f32[2,16,1024], index: 5, kind: output, shape index: {}]
  %s6 = sld [smem:[#allocation0]]
  $region65: #{tpu_custom_call.1} parent=0
    _
  %s8 = ssub.s32 1, %s6
  %s9 = scalar_select 0, %s8, %s6
  $region1: #{tpu_custom_call.1} parent=0
    #allocation2 [shape = 'u8[16384]{0}', space=vmem, size = 0x4000, scoped, tag = 'input window, operand 0']
    #allocation3 [shape = 's32[2]{0}', space=sflag, size = 0x8, scoped, tag = 'scoped memory for tpu_custom_call.1']
    #allocation4 [shape = 's32[2]{0}', space=sflag, size = 0x8, scoped, tag = 'scoped memory for tpu_custom_call.1']
    #allocation5 [shape = 'u8[32768]{0}', space=vmem, size = 0x8000, scoped, tag = 'input window, operand 1']
    #allocation6 [shape = 's32[2]{0}', space=sflag, size = 0x8, scoped, tag = 'scoped memory for tpu_custom_call.1']
    #allocation7 [shape = 'u8[262144]{0}', space=vmem, size = 0x40000, scoped, tag = 'input window, operand 2, single buffered']
    #allocation8 [shape = 'u8[65536]{0}', space=vmem, size = 0x10000, scoped, tag = 'output window, operand 0']
    %10 = vsyncpa [#allocation3], 0
    %s11 = scalar_lea.sflag [#allocation3], 1
    %12 = vsyncpa %s11, 0
    %13 = vsyncpa [#allocation6], 0
    %s14 = scalar_lea.sflag [#allocation6], 1
    %15 = vsyncpa %s14, 0
    %16 = vsyncpa [#allocation4], 0
    %s17 = scalar_lea.sflag [#allocation4], 1
    %18 = vsyncpa %s17, 0
    loop: start=0, step=1, limit=6
    $region2: #{tpu_custom_call.1} parent=1 // loop_pre_header
      _
    $region3: #{tpu_custom_call.1} parent=1 // loop_header
      %s20 = sphi 0, %s24
      %p21 = scmp.ge.s32.totalorder %s20, 6
      %s27 = sphi 0, %s39
      %s28 = sphi 0, %s35
      %s29 = sphi 0, %s27
      %s30 = sphi 0, %s28
      %s31 = sphi 0, %s29
      %s32 = sphi 0, %s30
      %s44 = sphi 0, %s46
      %s47 = sphi 0, %s44
      %s48 = sphi 0, %s47
      %s64 = sphi 0, %s48
      %s72 = sphi 0, %s74
      %s75 = sphi 0, %s72
      %s76 = sphi 0, %s75
      %s92 = sphi 0, %s76
      %s96 = sphi 0, %s96
      %s98 = sphi 0, %s96
      %s99 = sphi 0, %s98
      %s113 = sphi 0, %s99
      %s117 = sphi 0, %s117
      %s119 = sphi 0, %s117
      %s120 = sphi 0, %s119
      %s134 = sphi 0, %s120
      %s138 = sphi 0, %s138
      %s140 = sphi 0, %s138
      %s141 = sphi 0, %s140
      %s155 = sphi 0, %s141
      %s163 = sphi 0, %s165
      %s166 = sphi 0, %s163
      %s167 = sphi 0, %s166
      %s183 = sphi 0, %s167
    $region4: #{tpu_custom_call.1} parent=1 // loop_header_branch
      %23 = sbr.rel (%p21) target = $region8
    $region5: #{tpu_custom_call.1} parent=1 // loop_body
      %s25 = ssub.s32 %s20, 1
      %s26 = ssub.s32 %s20, 2
      %s33 = sadd.s32 1, %s28
      %p34 = scmp.ge.s32.totalorder %s33, 2
      %s35 = scalar_select %p34, 0, %s33
      %s36 = sadd.s32 1, %s27
      %s37 = scalar_select %p34, %s36, %s27
      %p38 = scmp.ge.s32.totalorder %s37, 2
      %s39 = scalar_select %p38, 0, %s37
      %s40 = ssub.s32 %s27, %s39
      %s41 = ssub.s32 %s28, %s35
      %s42 = sor.u32 %s40, %s41
      %p43 = scmp.eq.s32.totalorder %s42, 0
      %s45 = sadd.s32 %s44, 1
      %s46 = scalar_select %p43, %s44, %s45
      %p49 = pneg %p43
      %p50 = scmp.eq.s32.totalorder %s20, 3
      %p51 = por %p49, %p50
      %p52 = scmp.ne.s32.totalorder %s44, %s47
      %p53 = scmp.eq.s32.totalorder %s20, 0
      %p54 = por %p52, %p53
      %p55 = scmp.ne.s32.totalorder %s44, %s47
      %p56 = scmp.eq.s32.totalorder %s25, 3
      %p57 = por %p55, %p56
      %p58 = scmp.ne.s32.totalorder %s47, %s48
      %p59 = scmp.eq.s32.totalorder %s25, 0
      %p60 = por %p58, %p59
      %p61 = scmp.ne.s32.totalorder %s47, %s48
      %p62 = scmp.eq.s32.totalorder %s26, 3
      %p63 = por %p61, %p62
      %p65 = scmp.ne.s32.totalorder %s48, %s64
      %p66 = scmp.eq.s32.totalorder %s26, 0
      %p67 = por %p65, %p66
      %s68 = ssub.s32 %s27, %s39
      %s69 = ssub.s32 %s28, %s35
      %s70 = sor.u32 %s68, %s69
      %p71 = scmp.eq.s32.totalorder %s70, 0
      %s73 = sadd.s32 %s72, 1
      %s74 = scalar_select %p71, %s72, %s73
      %p77 = pneg %p71
      %p78 = scmp.eq.s32.totalorder %s20, 3
      %p79 = por %p77, %p78
      %p80 = scmp.ne.s32.totalorder %s72, %s75
      %p81 = scmp.eq.s32.totalorder %s20, 0
      %p82 = por %p80, %p81
      %p83 = scmp.ne.s32.totalorder %s72, %s75
      %p84 = scmp.eq.s32.totalorder %s25, 3
      %p85 = por %p83, %p84
      %p86 = scmp.ne.s32.totalorder %s75, %s76
      %p87 = scmp.eq.s32.totalorder %s25, 0
      %p88 = por %p86, %p87
      %p89 = scmp.ne.s32.totalorder %s75, %s76
      %p90 = scmp.eq.s32.totalorder %s26, 3
      %p91 = por %p89, %p90
      %p93 = scmp.ne.s32.totalorder %s76, %s92
      %p94 = scmp.eq.s32.totalorder %s26, 0
      %p95 = por %p93, %p94
      %s97 = sadd.s32 %s96, 1
      %p100 = scmp.eq.s32.totalorder %s20, 3
      %p101 = scmp.ne.s32.totalorder %s96, %s98
      %p102 = scmp.eq.s32.totalorder %s20, 0
      %p103 = por %p101, %p102
      %p104 = scmp.ne.s32.totalorder %s96, %s98
      %p105 = scmp.eq.s32.totalorder %s25, 3
      %p106 = por %p104, %p105
      %p107 = scmp.ne.s32.totalorder %s98, %s99
      %p108 = scmp.eq.s32.totalorder %s25, 0
      %p109 = por %p107, %p108
      %p110 = scmp.ne.s32.totalorder %s98, %s99
      %p111 = scmp.eq.s32.totalorder %s26, 3
      %p112 = por %p110, %p111
      %p114 = scmp.ne.s32.totalorder %s99, %s113
      %p115 = scmp.eq.s32.totalorder %s26, 0
      %p116 = por %p114, %p115
      %s118 = sadd.s32 %s117, 1
      %p121 = scmp.eq.s32.totalorder %s20, 3
      %p122 = scmp.ne.s32.totalorder %s117, %s119
      %p123 = scmp.eq.s32.totalorder %s20, 0
      %p124 = por %p122, %p123
      %p125 = scmp.ne.s32.totalorder %s117, %s119
      %p126 = scmp.eq.s32.totalorder %s25, 3
      %p127 = por %p125, %p126
      %p128 = scmp.ne.s32.totalorder %s119, %s120
      %p129 = scmp.eq.s32.totalorder %s25, 0
      %p130 = por %p128, %p129
      %p131 = scmp.ne.s32.totalorder %s119, %s120
      %p132 = scmp.eq.s32.totalorder %s26, 3
      %p133 = por %p131, %p132
      %p135 = scmp.ne.s32.totalorder %s120, %s134
      %p136 = scmp.eq.s32.totalorder %s26, 0
      %p137 = por %p135, %p136
      %s139 = sadd.s32 %s138, 1
      %p142 = scmp.eq.s32.totalorder %s20, 3
      %p143 = scmp.ne.s32.totalorder %s138, %s140
      %p144 = scmp.eq.s32.totalorder %s20, 0
      %p145 = por %p143, %p144
      %p146 = scmp.ne.s32.totalorder %s138, %s140
      %p147 = scmp.eq.s32.totalorder %s25, 3
      %p148 = por %p146, %p147
      %p149 = scmp.ne.s32.totalorder %s140, %s141
      %p150 = scmp.eq.s32.totalorder %s25, 0
      %p151 = por %p149, %p150
      %p152 = scmp.ne.s32.totalorder %s140, %s141
      %p153 = scmp.eq.s32.totalorder %s26, 3
      %p154 = por %p152, %p153
      %p156 = scmp.ne.s32.totalorder %s141, %s155
      %p157 = scmp.eq.s32.totalorder %s26, 0
      %p158 = por %p156, %p157
      %s159 = ssub.s32 %s27, %s39
      %s160 = ssub.s32 %s28, %s35
      %s161 = sor.u32 %s159, %s160
      %p162 = scmp.eq.s32.totalorder %s161, 0
      %s164 = sadd.s32 %s163, 1
      %s165 = scalar_select %p162, %s163, %s164
      %p168 = pneg %p162
      %p169 = scmp.eq.s32.totalorder %s20, 3
      %p170 = por %p168, %p169
      %p171 = scmp.ne.s32.totalorder %s163, %s166
      %p172 = scmp.eq.s32.totalorder %s20, 0
      %p173 = por %p171, %p172
      %p174 = scmp.ne.s32.totalorder %s163, %s166
      %p175 = scmp.eq.s32.totalorder %s25, 3
      %p176 = por %p174, %p175
      %p177 = scmp.ne.s32.totalorder %s166, %s167
      %p178 = scmp.eq.s32.totalorder %s25, 0
      %p179 = por %p177, %p178
      %p180 = scmp.ne.s32.totalorder %s166, %s167
      %p181 = scmp.eq.s32.totalorder %s26, 3
      %p182 = por %p180, %p181
      %p184 = scmp.ne.s32.totalorder %s167, %s183
      %p185 = scmp.eq.s32.totalorder %s26, 0
      %p186 = por %p184, %p185
      %p187 = scmp.le.s32.totalorder 1, %s20
      %p188 = scmp.lt.s32.totalorder %s20, 5
      %p189 = pnand %p187, %p188
      %p190 = pneg %p189
      // Predicated region
      $region9: #{tpu_custom_call.1} parent=5 // pred_check
        _
      $region10: #{tpu_custom_call.1} parent=5 // pred_check_branch
        %192 = sbr.rel (%p189) target = $region12
      $region11: #{tpu_custom_call.1} parent=5 // pred_region
        %s193 = ssub.s32 %s20, 1
        // Predicated region
        $region13: #{tpu_custom_call.1} parent=11 // pred_check
          %p194 = pneg %p109
        $region14: #{tpu_custom_call.1} parent=11 // pred_check_branch
          %196 = sbr.rel (%p194) target = $region16
        $region15: #{tpu_custom_call.1} parent=11 // pred_region
          %s198 = ssub.s32 8192, 8192
          %199 = vsyncadd [#allocation6], %s198
          %s200 = sshll.u32 [#allocation7], 4
          %s201 = int_to_ptr.vmem [resolvable:$true] %s200
          %206 = dma.hbm_to_vmem [thread:$0]  %s2, 8192, %s201, [#allocation6], 512, 512, 32
        $region16: #{tpu_custom_call.1} parent=11 // pred_fallthru
          _
        // Predicated region
        $region17: #{tpu_custom_call.1} parent=11 // pred_check
          %p207 = pneg %p130
        $region18: #{tpu_custom_call.1} parent=11 // pred_check_branch
          %209 = sbr.rel (%p207) target = $region20
        $region19: #{tpu_custom_call.1} parent=11 // pred_region
          _
        $region20: #{tpu_custom_call.1} parent=11 // pred_fallthru
          _
        // Predicated region
        $region21: #{tpu_custom_call.1} parent=11 // pred_check
          %p210 = pneg %p151
        $region22: #{tpu_custom_call.1} parent=11 // pred_check_branch
          %212 = sbr.rel (%p210) target = $region24
        $region23: #{tpu_custom_call.1} parent=11 // pred_region
          _
        $region24: #{tpu_custom_call.1} parent=11 // pred_fallthru
          _
      $region12: #{tpu_custom_call.1} parent=5 // pred_fallthru
        _
      %p213 = scmp.lt.s32.totalorder %s20, 4
      // Predicated region
      $region25: #{tpu_custom_call.1} parent=5 // pred_check
        %p214 = pneg %p213
      $region26: #{tpu_custom_call.1} parent=5 // pred_check_branch
        %216 = sbr.rel (%p214) target = $region28
      $region27: #{tpu_custom_call.1} parent=5 // pred_region
        // Predicated region
        $region29: #{tpu_custom_call.1} parent=27 // pred_check
          %p217 = pneg %p54
        $region30: #{tpu_custom_call.1} parent=27 // pred_check_branch
          %219 = sbr.rel (%p217) target = $region32
        $region31: #{tpu_custom_call.1} parent=27 // pred_region
          %s220 = sand.u32 %s44, 1
          %s221 = scalar_lea.sflag [#allocation3], %s220
          %s222 = sand.u32 %s44, 1
          %s223 = smul.addr %s222, 16
          %s224 = scalar_lea.vmem [#allocation2], %s223
          %s226 = ssub.s32 256, 256
          %227 = vsyncadd %s221, %s226
          %s228 = smul.addr %s27, 4
          %s229 = sadd.s32 %s28, %s228
          %s230 = smul.addr %s229, 128
          %s231 = scalar_lea.hbm %s0, %s230
          %s232 = sshll.u32 %s224, 4
          %s233 = int_to_ptr.vmem [resolvable:$true] %s232
          %238 = dma.hbm_to_vmem [thread:$0]  %s231, 256, %s233, %s221, 256, 128, 8
        $region32: #{tpu_custom_call.1} parent=27 // pred_fallthru
          _
        // Predicated region
        $region33: #{tpu_custom_call.1} parent=27 // pred_check
          %p239 = pneg %p82
        $region34: #{tpu_custom_call.1} parent=27 // pred_check_branch
          %241 = sbr.rel (%p239) target = $region36
        $region35: #{tpu_custom_call.1} parent=27 // pred_region
          %s242 = sand.u32 %s20, 1
          %s243 = scalar_lea.sflag [#allocation6], %s242
          %s244 = sand.u32 %s72, 1
          %s245 = smul.addr %s244, 32
          %s246 = scalar_lea.vmem [#allocation5], %s245
          %s247 = smul.u32 4, %s28
          %s249 = ssub.s32 512, 512
          %250 = vsyncadd %s243, %s249
          %s251 = smul.addr %s27, 8
          %s252 = sadd.s32 %s247, %s251
          %s253 = smul.addr %s252, 128
          %s254 = scalar_lea.hbm %s1, %s253
          %s256 = sshll.u32 %s246, 4
          %s257 = int_to_ptr.vmem [resolvable:$true] %s256
          %259 = dma.hbm_to_vmem [thread:$0]  %s254, 512, %s257, %s243
        $region36: #{tpu_custom_call.1} parent=27 // pred_fallthru
          _
      $region28: #{tpu_custom_call.1} parent=5 // pred_fallthru
        _
      %p260 = scmp.le.s32.totalorder 1, %s20
      %p261 = scmp.lt.s32.totalorder %s20, 5
      %p262 = pnand %p260, %p261
      %p263 = pneg %p262
      // Predicated region
      $region37: #{tpu_custom_call.1} parent=5 // pred_check
        _
      $region38: #{tpu_custom_call.1} parent=5 // pred_check_branch
        %265 = sbr.rel (%p262) target = $region40
      $region39: #{tpu_custom_call.1} parent=5 // pred_region
        %s266 = ssub.s32 %s20, 1
        %s267 = sand.u32 %s47, 1
        %s268 = scalar_lea.sflag [#allocation3], %s267
        %s269 = sand.u32 %s47, 1
        %s270 = smul.addr %s269, 16
        %s271 = scalar_lea.vmem [#allocation2], %s270
        // Predicated region
        $region41: #{tpu_custom_call.1} parent=39 // pred_check
          %p272 = pneg %p60
        $region42: #{tpu_custom_call.1} parent=39 // pred_check_branch
          %274 = sbr.rel (%p272) target = $region44
        $region43: #{tpu_custom_call.1} parent=39 // pred_region
          %275 = dma.done %s268, 256
        $region44: #{tpu_custom_call.1} parent=39 // pred_fallthru
          _
        %s276 = sand.u32 %s25, 1
        %s277 = scalar_lea.sflag [#allocation6], %s276
        %s278 = sand.u32 %s75, 1
        %s279 = smul.addr %s278, 32
        %s280 = scalar_lea.vmem [#allocation5], %s279
        // Predicated region
        $region45: #{tpu_custom_call.1} parent=39 // pred_check
          %p281 = pneg %p88
        $region46: #{tpu_custom_call.1} parent=39 // pred_check_branch
          %283 = sbr.rel (%p281) target = $region48
        $region47: #{tpu_custom_call.1} parent=39 // pred_region
          %284 = dma.done %s277, 512
        $region48: #{tpu_custom_call.1} parent=39 // pred_fallthru
          _
        // Predicated region
        $region49: #{tpu_custom_call.1} parent=39 // pred_check
          %p285 = pneg %p109
        $region50: #{tpu_custom_call.1} parent=39 // pred_check_branch
          %287 = sbr.rel (%p285) target = $region52
        $region51: #{tpu_custom_call.1} parent=39 // pred_region
          %288 = dma.done [#allocation6], 8192
        $region52: #{tpu_custom_call.1} parent=39 // pred_fallthru
          _
        %s289 = sand.u32 %s47, 1
        %s290 = scalar_lea.sflag [#allocation3], %s289
        %s291 = sand.u32 %s47, 1
        %s292 = smul.addr %s291, 16
        %s293 = scalar_lea.vmem [#allocation2], %s292
        %p294 = pneg %p60
        %p295 = pneg %p57
        %s296 = sand.u32 %s25, 1
        %s297 = scalar_lea.sflag [#allocation6], %s296
        %s298 = sand.u32 %s75, 1
        %s299 = smul.addr %s298, 32
        %s300 = scalar_lea.vmem [#allocation5], %s299
        %p301 = pneg %p88
        %p302 = pneg %p85
        %p303 = pneg %p109
        %p304 = pneg %p106
        %p305 = pneg %p130
        %p306 = pneg %p127
        %p307 = pneg %p151
        %p308 = pneg %p148
        %p309 = pneg %p179
        %p310 = pneg %p176
        %s311 = sand.u32 %s166, 1
        %s312 = scalar_lea.sflag [#allocation4], %s311
        %s313 = sand.u32 %s166, 1
        %s314 = smul.addr %s313, 64
        %s315 = scalar_lea.vmem [#allocation8], %s314
        %s316 = smul.u32 4, %s30
        %s317 = smul.u32 4, %s30
        %v318 = vld [vmem:[%s271] sm:$0xff]
        %v319 = vld [vmem:[%s271 + $0x8] sm:$0xff]
        %v320 = vld [vmem:[#allocation7] sm:$0xff]
        %v321 = vld [vmem:[#allocation7 + $0x8] sm:$0xff]
        %v322 = vld [vmem:[#allocation7 + $0x10] sm:$0xff]
        %v323 = vld [vmem:[#allocation7 + $0x18] sm:$0xff]
        %v324 = vld [vmem:[#allocation7 + $0x20] sm:$0xff]
        %v325 = vld [vmem:[#allocation7 + $0x28] sm:$0xff]
        %v326 = vld [vmem:[#allocation7 + $0x30] sm:$0xff]
        %v327 = vld [vmem:[#allocation7 + $0x38] sm:$0xff]
        %v328 = vld [vmem:[#allocation7 + $0x40] sm:$0xff]
        %v329 = vld [vmem:[#allocation7 + $0x48] sm:$0xff]
        %v330 = vld [vmem:[#allocation7 + $0x50] sm:$0xff]
        %v331 = vld [vmem:[#allocation7 + $0x58] sm:$0xff]
        %v332 = vld [vmem:[#allocation7 + $0x60] sm:$0xff]
        %v333 = vld [vmem:[#allocation7 + $0x68] sm:$0xff]
        %v334 = vld [vmem:[#allocation7 + $0x70] sm:$0xff]
        %v335 = vld [vmem:[#allocation7 + $0x78] sm:$0xff]
        %v336 = vld [vmem:[#allocation7 + $0x80] sm:$0xff]
        %v337 = vld [vmem:[#allocation7 + $0x88] sm:$0xff]
        %v338 = vld [vmem:[#allocation7 + $0x90] sm:$0xff]
        %v339 = vld [vmem:[#allocation7 + $0x98] sm:$0xff]
        %v340 = vld [vmem:[#allocation7 + $0xa0] sm:$0xff]
        %v341 = vld [vmem:[#allocation7 + $0xa8] sm:$0xff]
        %v342 = vld [vmem:[#allocation7 + $0xb0] sm:$0xff]
        %v343 = vld [vmem:[#allocation7 + $0xb8] sm:$0xff]
        %v344 = vld [vmem:[#allocation7 + $0xc0] sm:$0xff]
        %v345 = vld [vmem:[#allocation7 + $0xc8] sm:$0xff]
        %v346 = vld [vmem:[#allocation7 + $0xd0] sm:$0xff]
        %v347 = vld [vmem:[#allocation7 + $0xd8] sm:$0xff]
        %v348 = vld [vmem:[#allocation7 + $0xe0] sm:$0xff]
        %v349 = vld [vmem:[#allocation7 + $0xe8] sm:$0xff]
        %v350 = vld [vmem:[#allocation7 + $0xf0] sm:$0xff]
        %v351 = vld [vmem:[#allocation7 + $0xf8] sm:$0xff]
        %v352 = vld [vmem:[#allocation7 + $0x100] sm:$0xff]
        %v353 = vld [vmem:[#allocation7 + $0x108] sm:$0xff]
        %v354 = vld [vmem:[#allocation7 + $0x110] sm:$0xff]
        %v355 = vld [vmem:[#allocation7 + $0x118] sm:$0xff]
        %v356 = vld [vmem:[#allocation7 + $0x120] sm:$0xff]
        %v357 = vld [vmem:[#allocation7 + $0x128] sm:$0xff]
        %v358 = vld [vmem:[#allocation7 + $0x130] sm:$0xff]
        %v359 = vld [vmem:[#allocation7 + $0x138] sm:$0xff]
        %v360 = vld [vmem:[#allocation7 + $0x140] sm:$0xff]
        %v361 = vld [vmem:[#allocation7 + $0x148] sm:$0xff]
        %v362 = vld [vmem:[#allocation7 + $0x150] sm:$0xff]
        %v363 = vld [vmem:[#allocation7 + $0x158] sm:$0xff]
        %v364 = vld [vmem:[#allocation7 + $0x160] sm:$0xff]
        %v365 = vld [vmem:[#allocation7 + $0x168] sm:$0xff]
        %v366 = vld [vmem:[#allocation7 + $0x170] sm:$0xff]
        %v367 = vld [vmem:[#allocation7 + $0x178] sm:$0xff]
        %v368 = vld [vmem:[#allocation7 + $0x180] sm:$0xff]
        %v369 = vld [vmem:[#allocation7 + $0x188] sm:$0xff]
        %v370 = vld [vmem:[#allocation7 + $0x190] sm:$0xff]
        %v371 = vld [vmem:[#allocation7 + $0x198] sm:$0xff]
        %v372 = vld [vmem:[#allocation7 + $0x1a0] sm:$0xff]
        %v373 = vld [vmem:[#allocation7 + $0x1a8] sm:$0xff]
        %v374 = vld [vmem:[#allocation7 + $0x1b0] sm:$0xff]
        %v375 = vld [vmem:[#allocation7 + $0x1b8] sm:$0xff]
        %v376 = vld [vmem:[#allocation7 + $0x1c0] sm:$0xff]
        %v377 = vld [vmem:[#allocation7 + $0x1c8] sm:$0xff]
        %v378 = vld [vmem:[#allocation7 + $0x1d0] sm:$0xff]
        %v379 = vld [vmem:[#allocation7 + $0x1d8] sm:$0xff]
        %v380 = vld [vmem:[#allocation7 + $0x1e0] sm:$0xff]
        %v381 = vld [vmem:[#allocation7 + $0x1e8] sm:$0xff]
        %v382 = vld [vmem:[#allocation7 + $0x1f0] sm:$0xff]
        %v383 = vld [vmem:[#allocation7 + $0x1f8] sm:$0xff]
        %v384 = vld [vmem:[%s3] sm:$0xff]
        %v385 = vld [vmem:[%s3 + $0x8] sm:$0xff]
        %v386 = vld [vmem:[%s280] sm:$0xff]
        %v387 = vld [vmem:[%s280 + $0x8] sm:$0xff]
        %v388 = vld [vmem:[%s280 + $0x10] sm:$0xff]
        %v389 = vld [vmem:[%s280 + $0x18] sm:$0xff]
        %vm390 = vcmask 64512
        %v392 = vsel %vm390, %v384, 0
        %v395 = vsel %vm390, %v385, 0
        %397 = vmatprep.subr.mxu0 0.0
        %398 = vmatpush1.msra.mxu0 0.0
        %399 = vmatprep.subr.mxu0 0.0
        %400 = vmatpush1.msra.mxu0 0.0
        %401 = vmatprep.subr.mxu0 0.0
        %402 = vmatpush1.msra.mxu0 0.0
        %403 = vmatprep.subr.mxu0 0.0
        %404 = vmatpush1.msra.mxu0 0.0
        %405 = vmatprep.subr.mxu0 0.0
        %406 = vmatpush1.msra.mxu0 0.0
        %407 = vmatprep.subr.mxu0 0.0
        %408 = vmatpush1.msra.mxu0 0.0
        %409 = vmatprep.subr.mxu0 0.0
        %410 = vmatpush1.msra.mxu0 0.0
        %411 = vmatprep.subr.mxu0 0.0
        %412 = vmatpush1.msra.mxu0 0.0
        %413 = vmatprep.subr.mxu0 0.0
        %414 = vmatpush1.msra.mxu0 0.0
        %415 = vmatprep.subr.mxu0 0.0
        %416 = vmatpush1.msra.mxu0 0.0
        %417 = vmatprep.subr.mxu0 0.0
        %418 = vmatpush1.msra.mxu0 0.0
        %419 = vmatprep.subr.mxu0 0.0
        %420 = vmatpush1.msra.mxu0 0.0
        %421 = vmatprep.subr.mxu0 0.0
        %422 = vmatpush1.msra.mxu0 0.0
        %423 = vmatprep.subr.mxu0 0.0
        %424 = vmatpush1.msra.mxu0 0.0
        %425 = vmatprep.subr.mxu0 0.0
        %426 = vmatpush1.msra.mxu0 0.0
        %427 = vmatprep.subr.mxu0 %v387
        %428 = vmatpush1.msra.mxu0 %v386
        %429 = vmatprep.subr.mxu0 0.0
        %430 = vmatpush2.msra.mxu0 0.0
        %431 = vmatprep.subr.mxu0 0.0
        %432 = vmatpush2.msra.mxu0 0.0
        %433 = vmatprep.subr.mxu0 0.0
        %434 = vmatpush2.msra.mxu0 0.0
        %435 = vmatprep.subr.mxu0 0.0
        %436 = vmatpush2.msra.mxu0 0.0
        %437 = vmatprep.subr.mxu0 0.0
        %438 = vmatpush2.msra.mxu0 0.0
        %439 = vmatprep.subr.mxu0 0.0
        %440 = vmatpush2.msra.mxu0 0.0
        %441 = vmatprep.subr.mxu0 0.0
        %442 = vmatpush2.msra.mxu0 0.0
        %443 = vmatprep.subr.mxu0 0.0
        %444 = vmatpush2.msra.mxu0 0.0
        %445 = vmatprep.subr.mxu0 0.0
        %446 = vmatpush2.msra.mxu0 0.0
        %447 = vmatprep.subr.mxu0 0.0
        %448 = vmatpush2.msra.mxu0 0.0
        %449 = vmatprep.subr.mxu0 0.0
        %450 = vmatpush2.msra.mxu0 0.0
        %451 = vmatprep.subr.mxu0 0.0
        %452 = vmatpush2.msra.mxu0 0.0
        %453 = vmatprep.subr.mxu0 0.0
        %454 = vmatpush2.msra.mxu0 0.0
        %455 = vmatprep.subr.mxu0 0.0
        %456 = vmatpush2.msra.mxu0 0.0
        %457 = vmatprep.subr.mxu0 0.0
        %458 = vmatpush2.msra.mxu0 0.0
        %459 = vmatprep.subr.mxu0 0.0
        %460 = vmatpush2.msra.mxu0 0.0
        %461 = vmatprep.mubr.f32.mxu0 0.0
        %462 = vmatmul.mubr.f32.gmra.mxu0 %v392
        %v463 = vpop.f32.mrf.mxu0
        %v464 = vadd.f32 0.0, %v463
        %v465 = vpop.f32.mrf.mxu0
        %v466 = vadd.f32 0.0, %v465
        %467 = vmatprep.mubr.f32.mxu0 0.0
        %468 = vmatmul.mubr.f32.gmra.mxu0 %v395
        %v469 = vpop.f32.mrf.mxu0
        %v470 = vadd.f32 0.0, %v469
        %v471 = vpop.f32.mrf.mxu0
        %v472 = vadd.f32 0.0, %v471
        %473 = vdwg.mxu0
        %474 = vmatprep.subr.mxu0 0.0
        %475 = vmatpush1.msra.mxu0 0.0
        %476 = vmatprep.subr.mxu0 0.0
        %477 = vmatpush1.msra.mxu0 0.0
        %478 = vmatprep.subr.mxu0 0.0
        %479 = vmatpush1.msra.mxu0 0.0
        %480 = vmatprep.subr.mxu0 0.0
        %481 = vmatpush1.msra.mxu0 0.0
        %482 = vmatprep.subr.mxu0 0.0
        %483 = vmatpush1.msra.mxu0 0.0
        %484 = vmatprep.subr.mxu0 0.0
        %485 = vmatpush1.msra.mxu0 0.0
        %486 = vmatprep.subr.mxu0 0.0
        %487 = vmatpush1.msra.mxu0 0.0
        %488 = vmatprep.subr.mxu0 0.0
        %489 = vmatpush1.msra.mxu0 0.0
        %490 = vmatprep.subr.mxu0 0.0
        %491 = vmatpush1.msra.mxu0 0.0
        %492 = vmatprep.subr.mxu0 0.0
        %493 = vmatpush1.msra.mxu0 0.0
        %494 = vmatprep.subr.mxu0 0.0
        %495 = vmatpush1.msra.mxu0 0.0
        %496 = vmatprep.subr.mxu0 0.0
        %497 = vmatpush1.msra.mxu0 0.0
        %498 = vmatprep.subr.mxu0 0.0
        %499 = vmatpush1.msra.mxu0 0.0
        %500 = vmatprep.subr.mxu0 0.0
        %501 = vmatpush1.msra.mxu0 0.0
        %502 = vmatprep.subr.mxu0 0.0
        %503 = vmatpush1.msra.mxu0 0.0
        %504 = vmatprep.subr.mxu0 %v389
        %505 = vmatpush1.msra.mxu0 %v388
        %506 = vmatprep.subr.mxu0 0.0
        %507 = vmatpush2.msra.mxu0 0.0
        %508 = vmatprep.subr.mxu0 0.0
        %509 = vmatpush2.msra.mxu0 0.0
        %510 = vmatprep.subr.mxu0 0.0
        %511 = vmatpush2.msra.mxu0 0.0
        %512 = vmatprep.subr.mxu0 0.0
        %513 = vmatpush2.msra.mxu0 0.0
        %514 = vmatprep.subr.mxu0 0.0
        %515 = vmatpush2.msra.mxu0 0.0
        %516 = vmatprep.subr.mxu0 0.0
        %517 = vmatpush2.msra.mxu0 0.0
        %518 = vmatprep.subr.mxu0 0.0
        %519 = vmatpush2.msra.mxu0 0.0
        %520 = vmatprep.subr.mxu0 0.0
        %521 = vmatpush2.msra.mxu0 0.0
        %522 = vmatprep.subr.mxu0 0.0
        %523 = vmatpush2.msra.mxu0 0.0
        %524 = vmatprep.subr.mxu0 0.0
        %525 = vmatpush2.msra.mxu0 0.0
        %526 = vmatprep.subr.mxu0 0.0
        %527 = vmatpush2.msra.mxu0 0.0
        %528 = vmatprep.subr.mxu0 0.0
        %529 = vmatpush2.msra.mxu0 0.0
        %530 = vmatprep.subr.mxu0 0.0
        %531 = vmatpush2.msra.mxu0 0.0
        %532 = vmatprep.subr.mxu0 0.0
        %533 = vmatpush2.msra.mxu0 0.0
        %534 = vmatprep.subr.mxu0 0.0
        %535 = vmatpush2.msra.mxu0 0.0
        %536 = vmatprep.subr.mxu0 0.0
        %537 = vmatpush2.msra.mxu0 0.0
        %538 = vmatprep.mubr.f32.mxu0 0.0
        %539 = vmatmul.mubr.f32.gmra.mxu0 %v392
        %v540 = vpop.f32.mrf.mxu0
        %v541 = vadd.f32 0.0, %v540
        %v542 = vpop.f32.mrf.mxu0
        %v543 = vadd.f32 0.0, %v542
        %544 = vmatprep.mubr.f32.mxu0 0.0
        %545 = vmatmul.mubr.f32.gmra.mxu0 %v395
        %v546 = vpop.f32.mrf.mxu0
        %v547 = vadd.f32 0.0, %v546
        %v548 = vpop.f32.mrf.mxu0
        %v549 = vadd.f32 0.0, %v548
        %550 = vdwg.mxu0
        %551 = vmatprep.subr.mxu0 %v381
        %552 = vmatpush1.msra.mxu0 %v380
        %553 = vmatprep.subr.mxu0 %v377
        %554 = vmatpush1.msra.mxu0 %v376
        %555 = vmatprep.subr.mxu0 %v373
        %556 = vmatpush1.msra.mxu0 %v372
        %557 = vmatprep.subr.mxu0 %v369
        %558 = vmatpush1.msra.mxu0 %v368
        %559 = vmatprep.subr.mxu0 %v365
        %560 = vmatpush1.msra.mxu0 %v364
        %561 = vmatprep.subr.mxu0 %v361
        %562 = vmatpush1.msra.mxu0 %v360
        %563 = vmatprep.subr.mxu0 %v357
        %564 = vmatpush1.msra.mxu0 %v356
        %565 = vmatprep.subr.mxu0 %v353
        %566 = vmatpush1.msra.mxu0 %v352
        %567 = vmatprep.subr.mxu0 %v349
        %568 = vmatpush1.msra.mxu0 %v348
        %569 = vmatprep.subr.mxu0 %v345
        %570 = vmatpush1.msra.mxu0 %v344
        %571 = vmatprep.subr.mxu0 %v341
        %572 = vmatpush1.msra.mxu0 %v340
        %573 = vmatprep.subr.mxu0 %v337
        %574 = vmatpush1.msra.mxu0 %v336
        %575 = vmatprep.subr.mxu0 %v333
        %576 = vmatpush1.msra.mxu0 %v332
        %577 = vmatprep.subr.mxu0 %v329
        %578 = vmatpush1.msra.mxu0 %v328
        %579 = vmatprep.subr.mxu0 %v325
        %580 = vmatpush1.msra.mxu0 %v324
        %581 = vmatprep.subr.mxu0 %v321
        %582 = vmatpush1.msra.mxu0 %v320
        %583 = vmatprep.subr.mxu0 0.0
        %584 = vmatpush2.msra.mxu0 0.0
        %585 = vmatprep.subr.mxu0 0.0
        %586 = vmatpush2.msra.mxu0 0.0
        %587 = vmatprep.subr.mxu0 0.0
        %588 = vmatpush2.msra.mxu0 0.0
        %589 = vmatprep.subr.mxu0 0.0
        %590 = vmatpush2.msra.mxu0 0.0
        %591 = vmatprep.subr.mxu0 0.0
        %592 = vmatpush2.msra.mxu0 0.0
        %593 = vmatprep.subr.mxu0 0.0
        %594 = vmatpush2.msra.mxu0 0.0
        %595 = vmatprep.subr.mxu0 0.0
        %596 = vmatpush2.msra.mxu0 0.0
        %597 = vmatprep.subr.mxu0 0.0
        %598 = vmatpush2.msra.mxu0 0.0
        %599 = vmatprep.subr.mxu0 0.0
        %600 = vmatpush2.msra.mxu0 0.0
        %601 = vmatprep.subr.mxu0 0.0
        %602 = vmatpush2.msra.mxu0 0.0
        %603 = vmatprep.subr.mxu0 0.0
        %604 = vmatpush2.msra.mxu0 0.0
        %605 = vmatprep.subr.mxu0 0.0
        %606 = vmatpush2.msra.mxu0 0.0
        %607 = vmatprep.subr.mxu0 0.0
        %608 = vmatpush2.msra.mxu0 0.0
        %609 = vmatprep.subr.mxu0 0.0
        %610 = vmatpush2.msra.mxu0 0.0
        %611 = vmatprep.subr.mxu0 0.0
        %612 = vmatpush2.msra.mxu0 0.0
        %613 = vmatprep.subr.mxu0 0.0
        %614 = vmatpush2.msra.mxu0 0.0
        %615 = vmatprep.mubr.f32.mxu0 0.0
        %616 = vmatmul.mubr.f32.gmra.mxu0 %v318
        %v617 = vpop.f32.mrf.mxu0
        %v618 = vadd.f32 %v464, %v617
        %v619 = vpop.f32.mrf.mxu0
        %v620 = vadd.f32 %v466, %v619
        %621 = vmatprep.mubr.f32.mxu0 0.0
        %622 = vmatmul.mubr.f32.gmra.mxu0 %v319
        %v623 = vpop.f32.mrf.mxu0
        %v624 = vadd.f32 %v470, %v623
        %v625 = vpop.f32.mrf.mxu0
        %v626 = vadd.f32 %v472, %v625
        %627 = vdwg.mxu0
        %628 = vmatprep.subr.mxu0 %v383
        %629 = vmatpush1.msra.mxu0 %v382
        %630 = vmatprep.subr.mxu0 %v379
        %631 = vmatpush1.msra.mxu0 %v378
        %632 = vmatprep.subr.mxu0 %v375
        %633 = vmatpush1.msra.mxu0 %v374
        %634 = vmatprep.subr.mxu0 %v371
        %635 = vmatpush1.msra.mxu0 %v370
        %636 = vmatprep.subr.mxu0 %v367
        %637 = vmatpush1.msra.mxu0 %v366
        %638 = vmatprep.subr.mxu0 %v363
        %639 = vmatpush1.msra.mxu0 %v362
        %640 = vmatprep.subr.mxu0 %v359
        %641 = vmatpush1.msra.mxu0 %v358
        %642 = vmatprep.subr.mxu0 %v355
        %643 = vmatpush1.msra.mxu0 %v354
        %644 = vmatprep.subr.mxu0 %v351
        %645 = vmatpush1.msra.mxu0 %v350
        %646 = vmatprep.subr.mxu0 %v347
        %647 = vmatpush1.msra.mxu0 %v346
        %648 = vmatprep.subr.mxu0 %v343
        %649 = vmatpush1.msra.mxu0 %v342
        %650 = vmatprep.subr.mxu0 %v339
        %651 = vmatpush1.msra.mxu0 %v338
        %652 = vmatprep.subr.mxu0 %v335
        %653 = vmatpush1.msra.mxu0 %v334
        %654 = vmatprep.subr.mxu0 %v331
        %655 = vmatpush1.msra.mxu0 %v330
        %656 = vmatprep.subr.mxu0 %v327
        %657 = vmatpush1.msra.mxu0 %v326
        %658 = vmatprep.subr.mxu0 %v323
        %659 = vmatpush1.msra.mxu0 %v322
        %660 = vmatprep.subr.mxu0 0.0
        %661 = vmatpush2.msra.mxu0 0.0
        %662 = vmatprep.subr.mxu0 0.0
        %663 = vmatpush2.msra.mxu0 0.0
        %664 = vmatprep.subr.mxu0 0.0
        %665 = vmatpush2.msra.mxu0 0.0
        %666 = vmatprep.subr.mxu0 0.0
        %667 = vmatpush2.msra.mxu0 0.0
        %668 = vmatprep.subr.mxu0 0.0
        %669 = vmatpush2.msra.mxu0 0.0
        %670 = vmatprep.subr.mxu0 0.0
        %671 = vmatpush2.msra.mxu0 0.0
        %672 = vmatprep.subr.mxu0 0.0
        %673 = vmatpush2.msra.mxu0 0.0
        %674 = vmatprep.subr.mxu0 0.0
        %675 = vmatpush2.msra.mxu0 0.0
        %676 = vmatprep.subr.mxu0 0.0
        %677 = vmatpush2.msra.mxu0 0.0
        %678 = vmatprep.subr.mxu0 0.0
        %679 = vmatpush2.msra.mxu0 0.0
        %680 = vmatprep.subr.mxu0 0.0
        %681 = vmatpush2.msra.mxu0 0.0
        %682 = vmatprep.subr.mxu0 0.0
        %683 = vmatpush2.msra.mxu0 0.0
        %684 = vmatprep.subr.mxu0 0.0
        %685 = vmatpush2.msra.mxu0 0.0
        %686 = vmatprep.subr.mxu0 0.0
        %687 = vmatpush2.msra.mxu0 0.0
        %688 = vmatprep.subr.mxu0 0.0
        %689 = vmatpush2.msra.mxu0 0.0
        %690 = vmatprep.subr.mxu0 0.0
        %691 = vmatpush2.msra.mxu0 0.0
        %692 = vmatprep.mubr.f32.mxu0 0.0
        %693 = vmatmul.mubr.f32.gmra.mxu0 %v318
        %v694 = vpop.f32.mrf.mxu0
        %v695 = vadd.f32 %v541, %v694
        %v696 = vpop.f32.mrf.mxu0
        %v697 = vadd.f32 %v543, %v696
        %698 = vmatprep.mubr.f32.mxu0 0.0
        %699 = vmatmul.mubr.f32.gmra.mxu0 %v319
        %v700 = vpop.f32.mrf.mxu0
        %v701 = vadd.f32 %v547, %v700
        %v702 = vpop.f32.mrf.mxu0
        %v703 = vadd.f32 %v549, %v702
        %704 = vdwg.mxu0
        %v705 = vld [vmem:[%s4] sm:$0xff]
        %v706 = vld [vmem:[%s4 + $0x8] sm:$0xff]
        %708 = vset.pattern.permute.xlu0 0
        %709 = vperm.xlu0 %708, %v705
        %v710 = vpop.permute.xlu0 %709
        %713 = vset.pattern.permute.xlu0 0
        %714 = vperm.xlu0 %713, %v706
        %v715 = vpop.permute.xlu0 %714
        %v717 = vadd.f32 %v618, %v710
        %v718 = vadd.f32 %v620, %v710
        %v719 = vadd.f32 %v695, %v710
        %v720 = vadd.f32 %v697, %v710
        %v721 = vadd.f32 %v624, %v715
        %v722 = vadd.f32 %v626, %v715
        %v723 = vadd.f32 %v701, %v715
        %v724 = vadd.f32 %v703, %v715
        %725 = vst [vmem:[%s315] sm:$0xff] %v717
        %726 = vst [vmem:[%s315 + $0x8] sm:$0xff] %v718
        %727 = vst [vmem:[%s315 + $0x10] sm:$0xff] %v719
        %728 = vst [vmem:[%s315 + $0x18] sm:$0xff] %v720
        %729 = vst [vmem:[%s315 + $0x20] sm:$0xff] %v721
        %730 = vst [vmem:[%s315 + $0x28] sm:$0xff] %v722
        %731 = vst [vmem:[%s315 + $0x30] sm:$0xff] %v723
        %732 = vst [vmem:[%s315 + $0x38] sm:$0xff] %v724
        %s733 = sand.u32 %s166, 1
        %s734 = scalar_lea.sflag [#allocation4], %s733
        %s735 = sand.u32 %s166, 1
        %s736 = smul.addr %s735, 64
        %s737 = scalar_lea.vmem [#allocation8], %s736
        // Predicated region
        $region53: #{tpu_custom_call.1} parent=39 // pred_check
          %p738 = pneg %p176
        $region54: #{tpu_custom_call.1} parent=39 // pred_check_branch
          %740 = sbr.rel (%p738) target = $region56
        $region55: #{tpu_custom_call.1} parent=39 // pred_region
          %s741 = smul.u32 4, %s30
          %s743 = ssub.s32 1024, 1024
          %744 = vsyncadd %s734, %s743
          %s745 = smul.addr %s29, 16
          %s746 = sadd.s32 %s741, %s745
          %s747 = smul.addr %s746, 128
          %s748 = scalar_lea.hbm %s5, %s747
          %s749 = sshll.u32 %s737, 4
          %s750 = int_to_ptr.vmem [resolvable:$true] %s749
          %755 = dma.vmem_to_hbm [thread:$0]  %s750, 1024, %s748, %s734, 512, 1024, 32
        $region56: #{tpu_custom_call.1} parent=39 // pred_fallthru
          _
      $region40: #{tpu_custom_call.1} parent=5 // pred_fallthru
        _
      %p756 = scmp.le.s32.totalorder 2, %s20
      // Predicated region
      $region57: #{tpu_custom_call.1} parent=5 // pred_check
        %p757 = pneg %p756
      $region58: #{tpu_custom_call.1} parent=5 // pred_check_branch
        %759 = sbr.rel (%p757) target = $region60
      $region59: #{tpu_custom_call.1} parent=5 // pred_region
        %s760 = ssub.s32 %s20, 2
        // Predicated region
        $region61: #{tpu_custom_call.1} parent=59 // pred_check
          %p761 = pneg %p182
        $region62: #{tpu_custom_call.1} parent=59 // pred_check_branch
          %763 = sbr.rel (%p761) target = $region64
        $region63: #{tpu_custom_call.1} parent=59 // pred_region
          %s764 = sand.u32 %s167, 1
          %s765 = scalar_lea.sflag [#allocation4], %s764
          %s766 = sand.u32 %s167, 1
          %s767 = smul.addr %s766, 64
          %s768 = scalar_lea.vmem [#allocation8], %s767
          %769 = dma.done %s765, 1024
        $region64: #{tpu_custom_call.1} parent=59 // pred_fallthru
          _
      $region60: #{tpu_custom_call.1} parent=5 // pred_fallthru
        _
    $region6: #{tpu_custom_call.1} parent=1 // loop_footer
      %s24 = sadd.s32 1, %s20
    $region7: #{tpu_custom_call.1} parent=1 // loop_footer_branch
      %19 = sbr.rel target = $region3
    $region8: #{tpu_custom_call.1} parent=1 // loop_exit
      _
    %770 = vsyncpa [#allocation3], 1
    %s771 = scalar_lea.sflag [#allocation3], 1
    %772 = vsyncpa %s771, 1
    %773 = vsyncpa [#allocation6], 1
    %s774 = scalar_lea.sflag [#allocation6], 1
    %775 = vsyncpa %s774, 1
    %776 = vsyncpa [#allocation4], 1
    %s777 = scalar_lea.sflag [#allocation4], 1
    %778 = vsyncpa %s777, 1

// kernel: tpu_custom_call.1
$region0: #{tpu_custom_call.1}
  #allocation0 [shape = 'u32[]', space=smem, size = 0x4, offset = 0x4, fixed_abs, tag = 'smem constant byte address 0x4 - core index']
  #allocation1 [shape = 'u32[144,128]{1,0:T(1,128)}', space=vmem, size = 0x12000, scoped, tag = 'internal scratch']
  %s0 = inlined_call_operand.hbm [shape: f32[2,16,256], index: 0, kind: input, shape index: {}]
  %s1 = inlined_call_operand.hbm [shape: f32[2,8,1024], index: 1, kind: input, shape index: {}]
  %s2 = inlined_call_operand.hbm [shape: f32[128,512], index: 2, kind: input, shape index: {}]
  %s3 = inlined_call_operand.vmem [shape: f32[16,8], index: 3, kind: input, shape index: {}]
  %s4 = inlined_call_operand.vmem [shape: f32[16,1], index: 4, kind: input, shape index: {}]
  %s5 = inlined_call_operand.hbm [shape: f32[2,16,1024], index: 5, kind: output, shape index: {}]
  %s6 = sld [smem:[#allocation0]]
  $region65: #{tpu_custom_call.1} parent=0
    _
  %s8 = ssub.s32 1, %s6
  %s9 = scalar_select 0, %s8, %s6
  $region1: #{tpu_custom_call.1} parent=0
    #allocation2 [shape = 'u8[16384]{0}', space=vmem, size = 0x4000, scoped, tag = 'input window, operand 0']
    #allocation3 [shape = 's32[2]{0}', space=sflag, size = 0x8, scoped, tag = 'scoped memory for tpu_custom_call.1']
    #allocation4 [shape = 's32[2]{0}', space=sflag, size = 0x8, scoped, tag = 'scoped memory for tpu_custom_call.1']
    #allocation5 [shape = 'u8[32768]{0}', space=vmem, size = 0x8000, scoped, tag = 'input window, operand 1']
    #allocation6 [shape = 's32[2]{0}', space=sflag, size = 0x8, scoped, tag = 'scoped memory for tpu_custom_call.1']
    #allocation7 [shape = 'u8[262144]{0}', space=vmem, size = 0x40000, scoped, tag = 'input window, operand 2, single buffered']
    #allocation8 [shape = 'u8[65536]{0}', space=vmem, size = 0x10000, scoped, tag = 'output window, operand 0']
    %10 = vsyncpa [#allocation3], 0
    %s11 = scalar_lea.sflag [#allocation3], 1
    %12 = vsyncpa %s11, 0
    %13 = vsyncpa [#allocation6], 0
    %s14 = scalar_lea.sflag [#allocation6], 1
    %15 = vsyncpa %s14, 0
    %16 = vsyncpa [#allocation4], 0
    %s17 = scalar_lea.sflag [#allocation4], 1
    %18 = vsyncpa %s17, 0
    loop: start=0, step=1, limit=6
    $region2: #{tpu_custom_call.1} parent=1 // loop_pre_header
      _
    $region3: #{tpu_custom_call.1} parent=1 // loop_header
      %s20 = sphi 0, %s24
      %p21 = scmp.ge.s32.totalorder %s20, 6
      %s27 = sphi 0, %s39
      %s28 = sphi 0, %s35
      %s29 = sphi 0, %s27
      %s30 = sphi 0, %s28
      %s31 = sphi 0, %s29
      %s32 = sphi 0, %s30
      %s44 = sphi 0, %s46
      %s47 = sphi 0, %s44
      %s48 = sphi 0, %s47
      %s64 = sphi 0, %s48
      %s72 = sphi 0, %s74
      %s75 = sphi 0, %s72
      %s76 = sphi 0, %s75
      %s92 = sphi 0, %s76
      %s96 = sphi 0, %s96
      %s98 = sphi 0, %s96
      %s99 = sphi 0, %s98
      %s113 = sphi 0, %s99
      %s117 = sphi 0, %s117
      %s119 = sphi 0, %s117
      %s120 = sphi 0, %s119
      %s134 = sphi 0, %s120
      %s138 = sphi 0, %s138
      %s140 = sphi 0, %s138
      %s141 = sphi 0, %s140
      %s155 = sphi 0, %s141
      %s163 = sphi 0, %s165
      %s166 = sphi 0, %s163
      %s167 = sphi 0, %s166
      %s183 = sphi 0, %s167
    $region4: #{tpu_custom_call.1} parent=1 // loop_header_branch
      %23 = sbr.rel (%p21) target = $region8
    $region5: #{tpu_custom_call.1} parent=1 // loop_body
      %s25 = ssub.s32 %s20, 1
      %s26 = ssub.s32 %s20, 2
      %s33 = sadd.s32 1, %s28
      %p34 = scmp.ge.s32.totalorder %s33, 2
      %s35 = scalar_select %p34, 0, %s33
      %s36 = sadd.s32 1, %s27
      %s37 = scalar_select %p34, %s36, %s27
      %p38 = scmp.ge.s32.totalorder %s37, 2
      %s39 = scalar_select %p38, 0, %s37
      %s40 = ssub.s32 %s27, %s39
      %s41 = ssub.s32 %s28, %s35
      %s42 = sor.u32 %s40, %s41
      %p43 = scmp.eq.s32.totalorder %s42, 0
      %s45 = sadd.s32 %s44, 1
      %s46 = scalar_select %p43, %s44, %s45
      %p49 = pneg %p43
      %p50 = scmp.eq.s32.totalorder %s20, 3
      %p51 = por %p49, %p50
      %p52 = scmp.ne.s32.totalorder %s44, %s47
      %p53 = scmp.eq.s32.totalorder %s20, 0
      %p54 = por %p52, %p53
      %p55 = scmp.ne.s32.totalorder %s44, %s47
      %p56 = scmp.eq.s32.totalorder %s25, 3
      %p57 = por %p55, %p56
      %p58 = scmp.ne.s32.totalorder %s47, %s48
      %p59 = scmp.eq.s32.totalorder %s25, 0
      %p60 = por %p58, %p59
      %p61 = scmp.ne.s32.totalorder %s47, %s48
      %p62 = scmp.eq.s32.totalorder %s26, 3
      %p63 = por %p61, %p62
      %p65 = scmp.ne.s32.totalorder %s48, %s64
      %p66 = scmp.eq.s32.totalorder %s26, 0
      %p67 = por %p65, %p66
      %s68 = ssub.s32 %s27, %s39
      %s69 = ssub.s32 %s28, %s35
      %s70 = sor.u32 %s68, %s69
      %p71 = scmp.eq.s32.totalorder %s70, 0
      %s73 = sadd.s32 %s72, 1
      %s74 = scalar_select %p71, %s72, %s73
      %p77 = pneg %p71
      %p78 = scmp.eq.s32.totalorder %s20, 3
      %p79 = por %p77, %p78
      %p80 = scmp.ne.s32.totalorder %s72, %s75
      %p81 = scmp.eq.s32.totalorder %s20, 0
      %p82 = por %p80, %p81
      %p83 = scmp.ne.s32.totalorder %s72, %s75
      %p84 = scmp.eq.s32.totalorder %s25, 3
      %p85 = por %p83, %p84
      %p86 = scmp.ne.s32.totalorder %s75, %s76
      %p87 = scmp.eq.s32.totalorder %s25, 0
      %p88 = por %p86, %p87
      %p89 = scmp.ne.s32.totalorder %s75, %s76
      %p90 = scmp.eq.s32.totalorder %s26, 3
      %p91 = por %p89, %p90
      %p93 = scmp.ne.s32.totalorder %s76, %s92
      %p94 = scmp.eq.s32.totalorder %s26, 0
      %p95 = por %p93, %p94
      %s97 = sadd.s32 %s96, 1
      %p100 = scmp.eq.s32.totalorder %s20, 3
      %p101 = scmp.ne.s32.totalorder %s96, %s98
      %p102 = scmp.eq.s32.totalorder %s20, 0
      %p103 = por %p101, %p102
      %p104 = scmp.ne.s32.totalorder %s96, %s98
      %p105 = scmp.eq.s32.totalorder %s25, 3
      %p106 = por %p104, %p105
      %p107 = scmp.ne.s32.totalorder %s98, %s99
      %p108 = scmp.eq.s32.totalorder %s25, 0
      %p109 = por %p107, %p108
      %p110 = scmp.ne.s32.totalorder %s98, %s99
      %p111 = scmp.eq.s32.totalorder %s26, 3
      %p112 = por %p110, %p111
      %p114 = scmp.ne.s32.totalorder %s99, %s113
      %p115 = scmp.eq.s32.totalorder %s26, 0
      %p116 = por %p114, %p115
      %s118 = sadd.s32 %s117, 1
      %p121 = scmp.eq.s32.totalorder %s20, 3
      %p122 = scmp.ne.s32.totalorder %s117, %s119
      %p123 = scmp.eq.s32.totalorder %s20, 0
      %p124 = por %p122, %p123
      %p125 = scmp.ne.s32.totalorder %s117, %s119
      %p126 = scmp.eq.s32.totalorder %s25, 3
      %p127 = por %p125, %p126
      %p128 = scmp.ne.s32.totalorder %s119, %s120
      %p129 = scmp.eq.s32.totalorder %s25, 0
      %p130 = por %p128, %p129
      %p131 = scmp.ne.s32.totalorder %s119, %s120
      %p132 = scmp.eq.s32.totalorder %s26, 3
      %p133 = por %p131, %p132
      %p135 = scmp.ne.s32.totalorder %s120, %s134
      %p136 = scmp.eq.s32.totalorder %s26, 0
      %p137 = por %p135, %p136
      %s139 = sadd.s32 %s138, 1
      %p142 = scmp.eq.s32.totalorder %s20, 3
      %p143 = scmp.ne.s32.totalorder %s138, %s140
      %p144 = scmp.eq.s32.totalorder %s20, 0
      %p145 = por %p143, %p144
      %p146 = scmp.ne.s32.totalorder %s138, %s140
      %p147 = scmp.eq.s32.totalorder %s25, 3
      %p148 = por %p146, %p147
      %p149 = scmp.ne.s32.totalorder %s140, %s141
      %p150 = scmp.eq.s32.totalorder %s25, 0
      %p151 = por %p149, %p150
      %p152 = scmp.ne.s32.totalorder %s140, %s141
      %p153 = scmp.eq.s32.totalorder %s26, 3
      %p154 = por %p152, %p153
      %p156 = scmp.ne.s32.totalorder %s141, %s155
      %p157 = scmp.eq.s32.totalorder %s26, 0
      %p158 = por %p156, %p157
      %s159 = ssub.s32 %s27, %s39
      %s160 = ssub.s32 %s28, %s35
      %s161 = sor.u32 %s159, %s160
      %p162 = scmp.eq.s32.totalorder %s161, 0
      %s164 = sadd.s32 %s163, 1
      %s165 = scalar_select %p162, %s163, %s164
      %p168 = pneg %p162
      %p169 = scmp.eq.s32.totalorder %s20, 3
      %p170 = por %p168, %p169
      %p171 = scmp.ne.s32.totalorder %s163, %s166
      %p172 = scmp.eq.s32.totalorder %s20, 0
      %p173 = por %p171, %p172
      %p174 = scmp.ne.s32.totalorder %s163, %s166
      %p175 = scmp.eq.s32.totalorder %s25, 3
      %p176 = por %p174, %p175
      %p177 = scmp.ne.s32.totalorder %s166, %s167
      %p178 = scmp.eq.s32.totalorder %s25, 0
      %p179 = por %p177, %p178
      %p180 = scmp.ne.s32.totalorder %s166, %s167
      %p181 = scmp.eq.s32.totalorder %s26, 3
      %p182 = por %p180, %p181
      %p184 = scmp.ne.s32.totalorder %s167, %s183
      %p185 = scmp.eq.s32.totalorder %s26, 0
      %p186 = por %p184, %p185
      %p187 = scmp.le.s32.totalorder 1, %s20
      %p188 = scmp.lt.s32.totalorder %s20, 5
      %p189 = pnand %p187, %p188
      %p190 = pneg %p189
      // Predicated region
      $region9: #{tpu_custom_call.1} parent=5 // pred_check
        _
      $region10: #{tpu_custom_call.1} parent=5 // pred_check_branch
        %192 = sbr.rel (%p189) target = $region12
      $region11: #{tpu_custom_call.1} parent=5 // pred_region
        %s193 = ssub.s32 %s20, 1
        // Predicated region
        $region13: #{tpu_custom_call.1} parent=11 // pred_check
          %p194 = pneg %p109
        $region14: #{tpu_custom_call.1} parent=11 // pred_check_branch
          %196 = sbr.rel (%p194) target = $region16
        $region15: #{tpu_custom_call.1} parent=11 // pred_region
          %s198 = ssub.s32 8192, 8192
          %199 = vsyncadd [#allocation6], %s198
          %s200 = sshll.u32 [#allocation7], 4
          %s201 = int_to_ptr.vmem [resolvable:$true] %s200
          %206 = dma.hbm_to_vmem [thread:$0]  %s2, 8192, %s201, [#allocation6], 512, 512, 32
        $region16: #{tpu_custom_call.1} parent=11 // pred_fallthru
          _
        // Predicated region
        $region17: #{tpu_custom_call.1} parent=11 // pred_check
          %p207 = pneg %p130
        $region18: #{tpu_custom_call.1} parent=11 // pred_check_branch
          %209 = sbr.rel (%p207) target = $region20
        $region19: #{tpu_custom_call.1} parent=11 // pred_region
          _
        $region20: #{tpu_custom_call.1} parent=11 // pred_fallthru
          _
        // Predicated region
        $region21: #{tpu_custom_call.1} parent=11 // pred_check
          %p210 = pneg %p151
        $region22: #{tpu_custom_call.1} parent=11 // pred_check_branch
          %212 = sbr.rel (%p210) target = $region24
        $region23: #{tpu_custom_call.1} parent=11 // pred_region
          _
        $region24: #{tpu_custom_call.1} parent=11 // pred_fallthru
          _
      $region12: #{tpu_custom_call.1} parent=5 // pred_fallthru
        _
      %p213 = scmp.lt.s32.totalorder %s20, 4
      // Predicated region
      $region25: #{tpu_custom_call.1} parent=5 // pred_check
        %p214 = pneg %p213
      $region26: #{tpu_custom_call.1} parent=5 // pred_check_branch
        %216 = sbr.rel (%p214) target = $region28
      $region27: #{tpu_custom_call.1} parent=5 // pred_region
        // Predicated region
        $region29: #{tpu_custom_call.1} parent=27 // pred_check
          %p217 = pneg %p54
        $region30: #{tpu_custom_call.1} parent=27 // pred_check_branch
          %219 = sbr.rel (%p217) target = $region32
        $region31: #{tpu_custom_call.1} parent=27 // pred_region
          %s220 = sand.u32 %s44, 1
          %s221 = scalar_lea.sflag [#allocation3], %s220
          %s222 = sand.u32 %s44, 1
          %s223 = smul.addr %s222, 16
          %s224 = scalar_lea.vmem [#allocation2], %s223
          %s226 = ssub.s32 256, 256
          %227 = vsyncadd %s221, %s226
          %s228 = smul.addr %s27, 4
          %s229 = sadd.s32 %s28, %s228
          %s230 = smul.addr %s229, 128
          %s231 = scalar_lea.hbm %s0, %s230
          %s232 = sshll.u32 %s224, 4
          %s233 = int_to_ptr.vmem [resolvable:$true] %s232
          %238 = dma.hbm_to_vmem [thread:$0]  %s231, 256, %s233, %s221, 256, 128, 8
        $region32: #{tpu_custom_call.1} parent=27 // pred_fallthru
          _
        // Predicated region
        $region33: #{tpu_custom_call.1} parent=27 // pred_check
          %p239 = pneg %p82
        $region34: #{tpu_custom_call.1} parent=27 // pred_check_branch
          %241 = sbr.rel (%p239) target = $region36
        $region35: #{tpu_custom_call.1} parent=27 // pred_region
          %s242 = sand.u32 %s20, 1
          %s243 = scalar_lea.sflag [#allocation6], %s242
          %s244 = sand.u32 %s72, 1
          %s245 = smul.addr %s244, 32
          %s246 = scalar_lea.vmem [#allocation5], %s245
          %s247 = smul.u32 4, %s28
          %s249 = ssub.s32 512, 512
          %250 = vsyncadd %s243, %s249
          %s251 = smul.addr %s27, 8
          %s252 = sadd.s32 %s247, %s251
          %s253 = smul.addr %s252, 128
          %s254 = scalar_lea.hbm %s1, %s253
          %s256 = sshll.u32 %s246, 4
          %s257 = int_to_ptr.vmem [resolvable:$true] %s256
          %259 = dma.hbm_to_vmem [thread:$0]  %s254, 512, %s257, %s243
        $region36: #{tpu_custom_call.1} parent=27 // pred_fallthru
          _
      $region28: #{tpu_custom_call.1} parent=5 // pred_fallthru
        _
      %p260 = scmp.le.s32.totalorder 1, %s20
      %p261 = scmp.lt.s32.totalorder %s20, 5
      %p262 = pnand %p260, %p261
      %p263 = pneg %p262
      // Predicated region
      $region37: #{tpu_custom_call.1} parent=5 // pred_check
        _
      $region38: #{tpu_custom_call.1} parent=5 // pred_check_branch
        %265 = sbr.rel (%p262) target = $region40
      $region39: #{tpu_custom_call.1} parent=5 // pred_region
        %s266 = ssub.s32 %s20, 1
        %s267 = sand.u32 %s47, 1
        %s268 = scalar_lea.sflag [#allocation3], %s267
        %s269 = sand.u32 %s47, 1
        %s270 = smul.addr %s269, 16
        %s271 = scalar_lea.vmem [#allocation2], %s270
        // Predicated region
        $region41: #{tpu_custom_call.1} parent=39 // pred_check
          %p272 = pneg %p60
        $region42: #{tpu_custom_call.1} parent=39 // pred_check_branch
          %274 = sbr.rel (%p272) target = $region44
        $region43: #{tpu_custom_call.1} parent=39 // pred_region
          %275 = dma.done %s268, 256
        $region44: #{tpu_custom_call.1} parent=39 // pred_fallthru
          _
        %s276 = sand.u32 %s25, 1
        %s277 = scalar_lea.sflag [#allocation6], %s276
        %s278 = sand.u32 %s75, 1
        %s279 = smul.addr %s278, 32
        %s280 = scalar_lea.vmem [#allocation5], %s279
        // Predicated region
        $region45: #{tpu_custom_call.1} parent=39 // pred_check
          %p281 = pneg %p88
        $region46: #{tpu_custom_call.1} parent=39 // pred_check_branch
          %283 = sbr.rel (%p281) target = $region48
        $region47: #{tpu_custom_call.1} parent=39 // pred_region
          %284 = dma.done %s277, 512
        $region48: #{tpu_custom_call.1} parent=39 // pred_fallthru
          _
        // Predicated region
        $region49: #{tpu_custom_call.1} parent=39 // pred_check
          %p285 = pneg %p109
        $region50: #{tpu_custom_call.1} parent=39 // pred_check_branch
          %287 = sbr.rel (%p285) target = $region52
        $region51: #{tpu_custom_call.1} parent=39 // pred_region
          %288 = dma.done [#allocation6], 8192
        $region52: #{tpu_custom_call.1} parent=39 // pred_fallthru
          _
        %s289 = sand.u32 %s47, 1
        %s290 = scalar_lea.sflag [#allocation3], %s289
        %s291 = sand.u32 %s47, 1
        %s292 = smul.addr %s291, 16
        %s293 = scalar_lea.vmem [#allocation2], %s292
        %p294 = pneg %p60
        %p295 = pneg %p57
        %s296 = sand.u32 %s25, 1
        %s297 = scalar_lea.sflag [#allocation6], %s296
        %s298 = sand.u32 %s75, 1
        %s299 = smul.addr %s298, 32
        %s300 = scalar_lea.vmem [#allocation5], %s299
        %p301 = pneg %p88
        %p302 = pneg %p85
        %p303 = pneg %p109
        %p304 = pneg %p106
        %p305 = pneg %p130
        %p306 = pneg %p127
        %p307 = pneg %p151
        %p308 = pneg %p148
        %p309 = pneg %p179
        %p310 = pneg %p176
        %s311 = sand.u32 %s166, 1
        %s312 = scalar_lea.sflag [#allocation4], %s311
        %s313 = sand.u32 %s166, 1
        %s314 = smul.addr %s313, 64
        %s315 = scalar_lea.vmem [#allocation8], %s314
        %s316 = smul.u32 4, %s30
        %s317 = smul.u32 4, %s30
        %v318 = vld [vmem:[%s271] sm:$0xff]
        %v319 = vld [vmem:[%s271 + $0x8] sm:$0xff]
        %v320 = vld [vmem:[#allocation7] sm:$0xff]
        %v321 = vld [vmem:[#allocation7 + $0x8] sm:$0xff]
        %v322 = vld [vmem:[#allocation7 + $0x10] sm:$0xff]
        %v323 = vld [vmem:[#allocation7 + $0x18] sm:$0xff]
        %v324 = vld [vmem:[#allocation7 + $0x20] sm:$0xff]
        %v325 = vld [vmem:[#allocation7 + $0x28] sm:$0xff]
        %v326 = vld [vmem:[#allocation7 + $0x30] sm:$0xff]
        %v327 = vld [vmem:[#allocation7 + $0x38] sm:$0xff]
        %v328 = vld [vmem:[#allocation7 + $0x40] sm:$0xff]
        %v329 = vld [vmem:[#allocation7 + $0x48] sm:$0xff]
        %v330 = vld [vmem:[#allocation7 + $0x50] sm:$0xff]
        %v331 = vld [vmem:[#allocation7 + $0x58] sm:$0xff]
        %v332 = vld [vmem:[#allocation7 + $0x60] sm:$0xff]
        %v333 = vld [vmem:[#allocation7 + $0x68] sm:$0xff]
        %v334 = vld [vmem:[#allocation7 + $0x70] sm:$0xff]
        %v335 = vld [vmem:[#allocation7 + $0x78] sm:$0xff]
        %v336 = vld [vmem:[#allocation7 + $0x80] sm:$0xff]
        %v337 = vld [vmem:[#allocation7 + $0x88] sm:$0xff]
        %v338 = vld [vmem:[#allocation7 + $0x90] sm:$0xff]
        %v339 = vld [vmem:[#allocation7 + $0x98] sm:$0xff]
        %v340 = vld [vmem:[#allocation7 + $0xa0] sm:$0xff]
        %v341 = vld [vmem:[#allocation7 + $0xa8] sm:$0xff]
        %v342 = vld [vmem:[#allocation7 + $0xb0] sm:$0xff]
        %v343 = vld [vmem:[#allocation7 + $0xb8] sm:$0xff]
        %v344 = vld [vmem:[#allocation7 + $0xc0] sm:$0xff]
        %v345 = vld [vmem:[#allocation7 + $0xc8] sm:$0xff]
        %v346 = vld [vmem:[#allocation7 + $0xd0] sm:$0xff]
        %v347 = vld [vmem:[#allocation7 + $0xd8] sm:$0xff]
        %v348 = vld [vmem:[#allocation7 + $0xe0] sm:$0xff]
        %v349 = vld [vmem:[#allocation7 + $0xe8] sm:$0xff]
        %v350 = vld [vmem:[#allocation7 + $0xf0] sm:$0xff]
        %v351 = vld [vmem:[#allocation7 + $0xf8] sm:$0xff]
        %v352 = vld [vmem:[#allocation7 + $0x100] sm:$0xff]
        %v353 = vld [vmem:[#allocation7 + $0x108] sm:$0xff]
        %v354 = vld [vmem:[#allocation7 + $0x110] sm:$0xff]
        %v355 = vld [vmem:[#allocation7 + $0x118] sm:$0xff]
        %v356 = vld [vmem:[#allocation7 + $0x120] sm:$0xff]
        %v357 = vld [vmem:[#allocation7 + $0x128] sm:$0xff]
        %v358 = vld [vmem:[#allocation7 + $0x130] sm:$0xff]
        %v359 = vld [vmem:[#allocation7 + $0x138] sm:$0xff]
        %v360 = vld [vmem:[#allocation7 + $0x140] sm:$0xff]
        %v361 = vld [vmem:[#allocation7 + $0x148] sm:$0xff]
        %v362 = vld [vmem:[#allocation7 + $0x150] sm:$0xff]
        %v363 = vld [vmem:[#allocation7 + $0x158] sm:$0xff]
        %v364 = vld [vmem:[#allocation7 + $0x160] sm:$0xff]
        %v365 = vld [vmem:[#allocation7 + $0x168] sm:$0xff]
        %v366 = vld [vmem:[#allocation7 + $0x170] sm:$0xff]
        %v367 = vld [vmem:[#allocation7 + $0x178] sm:$0xff]
        %v368 = vld [vmem:[#allocation7 + $0x180] sm:$0xff]
        %v369 = vld [vmem:[#allocation7 + $0x188] sm:$0xff]
        %v370 = vld [vmem:[#allocation7 + $0x190] sm:$0xff]
        %v371 = vld [vmem:[#allocation7 + $0x198] sm:$0xff]
        %v372 = vld [vmem:[#allocation7 + $0x1a0] sm:$0xff]
        %v373 = vld [vmem:[#allocation7 + $0x1a8] sm:$0xff]
        %v374 = vld [vmem:[#allocation7 + $0x1b0] sm:$0xff]
        %v375 = vld [vmem:[#allocation7 + $0x1b8] sm:$0xff]
        %v376 = vld [vmem:[#allocation7 + $0x1c0] sm:$0xff]
        %v377 = vld [vmem:[#allocation7 + $0x1c8] sm:$0xff]
        %v378 = vld [vmem:[#allocation7 + $0x1d0] sm:$0xff]
        %v379 = vld [vmem:[#allocation7 + $0x1d8] sm:$0xff]
        %v380 = vld [vmem:[#allocation7 + $0x1e0] sm:$0xff]
        %v381 = vld [vmem:[#allocation7 + $0x1e8] sm:$0xff]
        %v382 = vld [vmem:[#allocation7 + $0x1f0] sm:$0xff]
        %v383 = vld [vmem:[#allocation7 + $0x1f8] sm:$0xff]
        %v384 = vld [vmem:[%s3] sm:$0xff]
        %v385 = vld [vmem:[%s3 + $0x8] sm:$0xff]
        %v386 = vld [vmem:[%s280] sm:$0xff]
        %v387 = vld [vmem:[%s280 + $0x8] sm:$0xff]
        %v388 = vld [vmem:[%s280 + $0x10] sm:$0xff]
        %v389 = vld [vmem:[%s280 + $0x18] sm:$0xff]
        %vm390 = vcmask 64512
        %v392 = vsel %vm390, %v384, 0
        %v395 = vsel %vm390, %v385, 0
        %397 = vmatprep.subr.mxu0 0.0
        %398 = vmatpush1.msra.mxu0 0.0
        %399 = vmatprep.subr.mxu0 0.0
        %400 = vmatpush1.msra.mxu0 0.0
        %401 = vmatprep.subr.mxu0 0.0
        %402 = vmatpush1.msra.mxu0 0.0
        %403 = vmatprep.subr.mxu0 0.0
        %404 = vmatpush1.msra.mxu0 0.0
        %405 = vmatprep.subr.mxu0 0.0
        %406 = vmatpush1.msra.mxu0 0.0
        %407 = vmatprep.subr.mxu0 0.0
        %408 = vmatpush1.msra.mxu0 0.0
        %409 = vmatprep.subr.mxu0 0.0
        %410 = vmatpush1.msra.mxu0 0.0
        %411 = vmatprep.subr.mxu0 0.0
        %412 = vmatpush1.msra.mxu0 0.0
        %413 = vmatprep.subr.mxu0 0.0
        %414 = vmatpush1.msra.mxu0 0.0
        %415 = vmatprep.subr.mxu0 0.0
        %416 = vmatpush1.msra.mxu0 0.0
        %417 = vmatprep.subr.mxu0 0.0
        %418 = vmatpush1.msra.mxu0 0.0
        %419 = vmatprep.subr.mxu0 0.0
        %420 = vmatpush1.msra.mxu0 0.0
        %421 = vmatprep.subr.mxu0 0.0
        %422 = vmatpush1.msra.mxu0 0.0
        %423 = vmatprep.subr.mxu0 0.0
        %424 = vmatpush1.msra.mxu0 0.0
        %425 = vmatprep.subr.mxu0 0.0
        %426 = vmatpush1.msra.mxu0 0.0
        %427 = vmatprep.subr.mxu0 %v387
        %428 = vmatpush1.msra.mxu0 %v386
        %429 = vmatprep.subr.mxu0 0.0
        %430 = vmatpush2.msra.mxu0 0.0
        %431 = vmatprep.subr.mxu0 0.0
        %432 = vmatpush2.msra.mxu0 0.0
        %433 = vmatprep.subr.mxu0 0.0
        %434 = vmatpush2.msra.mxu0 0.0
        %435 = vmatprep.subr.mxu0 0.0
        %436 = vmatpush2.msra.mxu0 0.0
        %437 = vmatprep.subr.mxu0 0.0
        %438 = vmatpush2.msra.mxu0 0.0
        %439 = vmatprep.subr.mxu0 0.0
        %440 = vmatpush2.msra.mxu0 0.0
        %441 = vmatprep.subr.mxu0 0.0
        %442 = vmatpush2.msra.mxu0 0.0
        %443 = vmatprep.subr.mxu0 0.0
        %444 = vmatpush2.msra.mxu0 0.0
        %445 = vmatprep.subr.mxu0 0.0
        %446 = vmatpush2.msra.mxu0 0.0
        %447 = vmatprep.subr.mxu0 0.0
        %448 = vmatpush2.msra.mxu0 0.0
        %449 = vmatprep.subr.mxu0 0.0
        %450 = vmatpush2.msra.mxu0 0.0
        %451 = vmatprep.subr.mxu0 0.0
        %452 = vmatpush2.msra.mxu0 0.0
        %453 = vmatprep.subr.mxu0 0.0
        %454 = vmatpush2.msra.mxu0 0.0
        %455 = vmatprep.subr.mxu0 0.0
        %456 = vmatpush2.msra.mxu0 0.0
        %457 = vmatprep.subr.mxu0 0.0
        %458 = vmatpush2.msra.mxu0 0.0
        %459 = vmatprep.subr.mxu0 0.0
        %460 = vmatpush2.msra.mxu0 0.0
        %461 = vmatprep.mubr.f32.mxu0 0.0
        %462 = vmatmul.mubr.f32.gmra.mxu0 %v392
        %v463 = vpop.f32.mrf.mxu0
        %v464 = vadd.f32 0.0, %v463
        %v465 = vpop.f32.mrf.mxu0
        %v466 = vadd.f32 0.0, %v465
        %467 = vmatprep.mubr.f32.mxu0 0.0
        %468 = vmatmul.mubr.f32.gmra.mxu0 %v395
        %v469 = vpop.f32.mrf.mxu0
        %v470 = vadd.f32 0.0, %v469
        %v471 = vpop.f32.mrf.mxu0
        %v472 = vadd.f32 0.0, %v471
        %473 = vdwg.mxu0
        %474 = vmatprep.subr.mxu0 0.0
        %475 = vmatpush1.msra.mxu0 0.0
        %476 = vmatprep.subr.mxu0 0.0
        %477 = vmatpush1.msra.mxu0 0.0
        %478 = vmatprep.subr.mxu0 0.0
        %479 = vmatpush1.msra.mxu0 0.0
        %480 = vmatprep.subr.mxu0 0.0
        %481 = vmatpush1.msra.mxu0 0.0
        %482 = vmatprep.subr.mxu0 0.0
        %483 = vmatpush1.msra.mxu0 0.0
        %484 = vmatprep.subr.mxu0 0.0
        %485 = vmatpush1.msra.mxu0 0.0
        %486 = vmatprep.subr.mxu0 0.0
        %487 = vmatpush1.msra.mxu0 0.0
        %488 = vmatprep.subr.mxu0 0.0
        %489 = vmatpush1.msra.mxu0 0.0
        %490 = vmatprep.subr.mxu0 0.0
        %491 = vmatpush1.msra.mxu0 0.0
        %492 = vmatprep.subr.mxu0 0.0
        %493 = vmatpush1.msra.mxu0 0.0
        %494 = vmatprep.subr.mxu0 0.0
        %495 = vmatpush1.msra.mxu0 0.0
        %496 = vmatprep.subr.mxu0 0.0
        %497 = vmatpush1.msra.mxu0 0.0
        %498 = vmatprep.subr.mxu0 0.0
        %499 = vmatpush1.msra.mxu0 0.0
        %500 = vmatprep.subr.mxu0 0.0
        %501 = vmatpush1.msra.mxu0 0.0
        %502 = vmatprep.subr.mxu0 0.0
        %503 = vmatpush1.msra.mxu0 0.0
        %504 = vmatprep.subr.mxu0 %v389
        %505 = vmatpush1.msra.mxu0 %v388
        %506 = vmatprep.subr.mxu0 0.0
        %507 = vmatpush2.msra.mxu0 0.0
        %508 = vmatprep.subr.mxu0 0.0
        %509 = vmatpush2.msra.mxu0 0.0
        %510 = vmatprep.subr.mxu0 0.0
        %511 = vmatpush2.msra.mxu0 0.0
        %512 = vmatprep.subr.mxu0 0.0
        %513 = vmatpush2.msra.mxu0 0.0
        %514 = vmatprep.subr.mxu0 0.0
        %515 = vmatpush2.msra.mxu0 0.0
        %516 = vmatprep.subr.mxu0 0.0
        %517 = vmatpush2.msra.mxu0 0.0
        %518 = vmatprep.subr.mxu0 0.0
        %519 = vmatpush2.msra.mxu0 0.0
        %520 = vmatprep.subr.mxu0 0.0
        %521 = vmatpush2.msra.mxu0 0.0
        %522 = vmatprep.subr.mxu0 0.0
        %523 = vmatpush2.msra.mxu0 0.0
        %524 = vmatprep.subr.mxu0 0.0
        %525 = vmatpush2.msra.mxu0 0.0
        %526 = vmatprep.subr.mxu0 0.0
        %527 = vmatpush2.msra.mxu0 0.0
        %528 = vmatprep.subr.mxu0 0.0
        %529 = vmatpush2.msra.mxu0 0.0
        %530 = vmatprep.subr.mxu0 0.0
        %531 = vmatpush2.msra.mxu0 0.0
        %532 = vmatprep.subr.mxu0 0.0
        %533 = vmatpush2.msra.mxu0 0.0
        %534 = vmatprep.subr.mxu0 0.0
        %535 = vmatpush2.msra.mxu0 0.0
        %536 = vmatprep.subr.mxu0 0.0
        %537 = vmatpush2.msra.mxu0 0.0
        %538 = vmatprep.mubr.f32.mxu0 0.0
        %539 = vmatmul.mubr.f32.gmra.mxu0 %v392
        %v540 = vpop.f32.mrf.mxu0
        %v541 = vadd.f32 0.0, %v540
        %v542 = vpop.f32.mrf.mxu0
        %v543 = vadd.f32 0.0, %v542
        %544 = vmatprep.mubr.f32.mxu0 0.0
        %545 = vmatmul.mubr.f32.gmra.mxu0 %v395
        %v546 = vpop.f32.mrf.mxu0
        %v547 = vadd.f32 0.0, %v546
        %v548 = vpop.f32.mrf.mxu0
        %v549 = vadd.f32 0.0, %v548
        %550 = vdwg.mxu0
        %551 = vmatprep.subr.mxu0 %v381
        %552 = vmatpush1.msra.mxu0 %v380
        %553 = vmatprep.subr.mxu0 %v377
        %554 = vmatpush1.msra.mxu0 %v376
        %555 = vmatprep.subr.mxu0 %v373
        %556 = vmatpush1.msra.mxu0 %v372
        %557 = vmatprep.subr.mxu0 %v369
        %558 = vmatpush1.msra.mxu0 %v368
        %559 = vmatprep.subr.mxu0 %v365
        %560 = vmatpush1.msra.mxu0 %v364
        %561 = vmatprep.subr.mxu0 %v361
        %562 = vmatpush1.msra.mxu0 %v360
        %563 = vmatprep.subr.mxu0 %v357
        %564 = vmatpush1.msra.mxu0 %v356
        %565 = vmatprep.subr.mxu0 %v353
        %566 = vmatpush1.msra.mxu0 %v352
        %567 = vmatprep.subr.mxu0 %v349
        %568 = vmatpush1.msra.mxu0 %v348
        %569 = vmatprep.subr.mxu0 %v345
        %570 = vmatpush1.msra.mxu0 %v344
        %571 = vmatprep.subr.mxu0 %v341
        %572 = vmatpush1.msra.mxu0 %v340
        %573 = vmatprep.subr.mxu0 %v337
        %574 = vmatpush1.msra.mxu0 %v336
        %575 = vmatprep.subr.mxu0 %v333
        %576 = vmatpush1.msra.mxu0 %v332
        %577 = vmatprep.subr.mxu0 %v329
        %578 = vmatpush1.msra.mxu0 %v328
        %579 = vmatprep.subr.mxu0 %v325
        %580 = vmatpush1.msra.mxu0 %v324
        %581 = vmatprep.subr.mxu0 %v321
        %582 = vmatpush1.msra.mxu0 %v320
        %583 = vmatprep.subr.mxu0 0.0
        %584 = vmatpush2.msra.mxu0 0.0
        %585 = vmatprep.subr.mxu0 0.0
        %586 = vmatpush2.msra.mxu0 0.0
        %587 = vmatprep.subr.mxu0 0.0
        %588 = vmatpush2.msra.mxu0 0.0
        %589 = vmatprep.subr.mxu0 0.0
        %590 = vmatpush2.msra.mxu0 0.0
        %591 = vmatprep.subr.mxu0 0.0
        %592 = vmatpush2.msra.mxu0 0.0
        %593 = vmatprep.subr.mxu0 0.0
        %594 = vmatpush2.msra.mxu0 0.0
        %595 = vmatprep.subr.mxu0 0.0
        %596 = vmatpush2.msra.mxu0 0.0
        %597 = vmatprep.subr.mxu0 0.0
        %598 = vmatpush2.msra.mxu0 0.0
        %599 = vmatprep.subr.mxu0 0.0
        %600 = vmatpush2.msra.mxu0 0.0
        %601 = vmatprep.subr.mxu0 0.0
        %602 = vmatpush2.msra.mxu0 0.0
        %603 = vmatprep.subr.mxu0 0.0
        %604 = vmatpush2.msra.mxu0 0.0
        %605 = vmatprep.subr.mxu0 0.0
        %606 = vmatpush2.msra.mxu0 0.0
        %607 = vmatprep.subr.mxu0 0.0
        %608 = vmatpush2.msra.mxu0 0.0
        %609 = vmatprep.subr.mxu0 0.0
        %610 = vmatpush2.msra.mxu0 0.0
        %611 = vmatprep.subr.mxu0 0.0
        %612 = vmatpush2.msra.mxu0 0.0
        %613 = vmatprep.subr.mxu0 0.0
        %614 = vmatpush2.msra.mxu0 0.0
        %615 = vmatprep.mubr.f32.mxu0 0.0
        %616 = vmatmul.mubr.f32.gmra.mxu0 %v318
        %v617 = vpop.f32.mrf.mxu0
        %v618 = vadd.f32 %v464, %v617
        %v619 = vpop.f32.mrf.mxu0
        %v620 = vadd.f32 %v466, %v619
        %621 = vmatprep.mubr.f32.mxu0 0.0
        %622 = vmatmul.mubr.f32.gmra.mxu0 %v319
        %v623 = vpop.f32.mrf.mxu0
        %v624 = vadd.f32 %v470, %v623
        %v625 = vpop.f32.mrf.mxu0
        %v626 = vadd.f32 %v472, %v625
        %627 = vdwg.mxu0
        %628 = vmatprep.subr.mxu0 %v383
        %629 = vmatpush1.msra.mxu0 %v382
        %630 = vmatprep.subr.mxu0 %v379
        %631 = vmatpush1.msra.mxu0 %v378
        %632 = vmatprep.subr.mxu0 %v375
        %633 = vmatpush1.msra.mxu0 %v374
        %634 = vmatprep.subr.mxu0 %v371
        %635 = vmatpush1.msra.mxu0 %v370
        %636 = vmatprep.subr.mxu0 %v367
        %637 = vmatpush1.msra.mxu0 %v366
        %638 = vmatprep.subr.mxu0 %v363
        %639 = vmatpush1.msra.mxu0 %v362
        %640 = vmatprep.subr.mxu0 %v359
        %641 = vmatpush1.msra.mxu0 %v358
        %642 = vmatprep.subr.mxu0 %v355
        %643 = vmatpush1.msra.mxu0 %v354
        %644 = vmatprep.subr.mxu0 %v351
        %645 = vmatpush1.msra.mxu0 %v350
        %646 = vmatprep.subr.mxu0 %v347
        %647 = vmatpush1.msra.mxu0 %v346
        %648 = vmatprep.subr.mxu0 %v343
        %649 = vmatpush1.msra.mxu0 %v342
        %650 = vmatprep.subr.mxu0 %v339
        %651 = vmatpush1.msra.mxu0 %v338
        %652 = vmatprep.subr.mxu0 %v335
        %653 = vmatpush1.msra.mxu0 %v334
        %654 = vmatprep.subr.mxu0 %v331
        %655 = vmatpush1.msra.mxu0 %v330
        %656 = vmatprep.subr.mxu0 %v327
        %657 = vmatpush1.msra.mxu0 %v326
        %658 = vmatprep.subr.mxu0 %v323
        %659 = vmatpush1.msra.mxu0 %v322
        %660 = vmatprep.subr.mxu0 0.0
        %661 = vmatpush2.msra.mxu0 0.0
        %662 = vmatprep.subr.mxu0 0.0
        %663 = vmatpush2.msra.mxu0 0.0
        %664 = vmatprep.subr.mxu0 0.0
        %665 = vmatpush2.msra.mxu0 0.0
        %666 = vmatprep.subr.mxu0 0.0
        %667 = vmatpush2.msra.mxu0 0.0
        %668 = vmatprep.subr.mxu0 0.0
        %669 = vmatpush2.msra.mxu0 0.0
        %670 = vmatprep.subr.mxu0 0.0
        %671 = vmatpush2.msra.mxu0 0.0
        %672 = vmatprep.subr.mxu0 0.0
        %673 = vmatpush2.msra.mxu0 0.0
        %674 = vmatprep.subr.mxu0 0.0
        %675 = vmatpush2.msra.mxu0 0.0
        %676 = vmatprep.subr.mxu0 0.0
        %677 = vmatpush2.msra.mxu0 0.0
        %678 = vmatprep.subr.mxu0 0.0
        %679 = vmatpush2.msra.mxu0 0.0
        %680 = vmatprep.subr.mxu0 0.0
        %681 = vmatpush2.msra.mxu0 0.0
        %682 = vmatprep.subr.mxu0 0.0
        %683 = vmatpush2.msra.mxu0 0.0
        %684 = vmatprep.subr.mxu0 0.0
        %685 = vmatpush2.msra.mxu0 0.0
        %686 = vmatprep.subr.mxu0 0.0
        %687 = vmatpush2.msra.mxu0 0.0
        %688 = vmatprep.subr.mxu0 0.0
        %689 = vmatpush2.msra.mxu0 0.0
        %690 = vmatprep.subr.mxu0 0.0
        %691 = vmatpush2.msra.mxu0 0.0
        %692 = vmatprep.mubr.f32.mxu0 0.0
        %693 = vmatmul.mubr.f32.gmra.mxu0 %v318
        %v694 = vpop.f32.mrf.mxu0
        %v695 = vadd.f32 %v541, %v694
        %v696 = vpop.f32.mrf.mxu0
        %v697 = vadd.f32 %v543, %v696
        %698 = vmatprep.mubr.f32.mxu0 0.0
        %699 = vmatmul.mubr.f32.gmra.mxu0 %v319
        %v700 = vpop.f32.mrf.mxu0
        %v701 = vadd.f32 %v547, %v700
        %v702 = vpop.f32.mrf.mxu0
        %v703 = vadd.f32 %v549, %v702
        %704 = vdwg.mxu0
        %v705 = vld [vmem:[%s4] sm:$0xff]
        %v706 = vld [vmem:[%s4 + $0x8] sm:$0xff]
        %708 = vset.pattern.permute.xlu0 0
        %709 = vperm.xlu0 %708, %v705
        %v710 = vpop.permute.xlu0 %709
        %713 = vset.pattern.permute.xlu0 0
        %714 = vperm.xlu0 %713, %v706
        %v715 = vpop.permute.xlu0 %714
        %v717 = vadd.f32 %v618, %v710
        %v718 = vadd.f32 %v620, %v710
        %v719 = vadd.f32 %v695, %v710
        %v720 = vadd.f32 %v697, %v710
        %v721 = vadd.f32 %v624, %v715
        %v722 = vadd.f32 %v626, %v715
        %v723 = vadd.f32 %v701, %v715
        %v724 = vadd.f32 %v703, %v715
        %725 = vst [vmem:[%s315] sm:$0xff] %v717
        %726 = vst [vmem:[%s315 + $0x8] sm:$0xff] %v718
        %727 = vst [vmem:[%s315 + $0x10] sm:$0xff] %v719
        %728 = vst [vmem:[%s315 + $0x18] sm:$0xff] %v720
        %729 = vst [vmem:[%s315 + $0x20] sm:$0xff] %v721
        %730 = vst [vmem:[%s315 + $0x28] sm:$0xff] %v722
        %731 = vst [vmem:[%s315 + $0x30] sm:$0xff] %v723
        %732 = vst [vmem:[%s315 + $0x38] sm:$0xff] %v724
        %s733 = sand.u32 %s166, 1
        %s734 = scalar_lea.sflag [#allocation4], %s733
        %s735 = sand.u32 %s166, 1
        %s736 = smul.addr %s735, 64
        %s737 = scalar_lea.vmem [#allocation8], %s736
        // Predicated region
        $region53: #{tpu_custom_call.1} parent=39 // pred_check
          %p738 = pneg %p176
        $region54: #{tpu_custom_call.1} parent=39 // pred_check_branch
          %740 = sbr.rel (%p738) target = $region56
        $region55: #{tpu_custom_call.1} parent=39 // pred_region
          %s741 = smul.u32 4, %s30
          %s743 = ssub.s32 1024, 1024
          %744 = vsyncadd %s734, %s743
          %s745 = smul.addr %s29, 16
          %s746 = sadd.s32 %s741, %s745
          %s747 = smul.addr %s746, 128
          %s748 = scalar_lea.hbm %s5, %s747
          %s749 = sshll.u32 %s737, 4
          %s750 = int_to_ptr.vmem [resolvable:$true] %s749
          %755 = dma.vmem_to_hbm [thread:$0]  %s750, 1024, %s748, %s734, 512, 1024, 32
        $region56: #{tpu_custom_call.1} parent=39 // pred_fallthru
          _
      $region40: #{tpu_custom_call.1} parent=5 // pred_fallthru
        _
      %p756 = scmp.le.s32.totalorder 2, %s20
      // Predicated region
      $region57: #{tpu_custom_call.1} parent=5 // pred_check
        %p757 = pneg %p756
      $region58: #{tpu_custom_call.1} parent=5 // pred_check_branch
        %759 = sbr.rel (%p757) target = $region60
      $region59: #{tpu_custom_call.1} parent=5 // pred_region
        %s760 = ssub.s32 %s20, 2
        // Predicated region
        $region61: #{tpu_custom_call.1} parent=59 // pred_check
          %p761 = pneg %p182
        $region62: #{tpu_custom_call.1} parent=59 // pred_check_branch
          %763 = sbr.rel (%p761) target = $region64
        $region63: #{tpu_custom_call.1} parent=59 // pred_region
          %s764 = sand.u32 %s167, 1
          %s765 = scalar_lea.sflag [#allocation4], %s764
          %s766 = sand.u32 %s167, 1
          %s767 = smul.addr %s766, 64
          %s768 = scalar_lea.vmem [#allocation8], %s767
          %769 = dma.done %s765, 1024
        $region64: #{tpu_custom_call.1} parent=59 // pred_fallthru
          _
      $region60: #{tpu_custom_call.1} parent=5 // pred_fallthru
        _
    $region6: #{tpu_custom_call.1} parent=1 // loop_footer
      %s24 = sadd.s32 1, %s20
    $region7: #{tpu_custom_call.1} parent=1 // loop_footer_branch
      %19 = sbr.rel target = $region3
    $region8: #{tpu_custom_call.1} parent=1 // loop_exit
      _
    %770 = vsyncpa [#allocation3], 1
    %s771 = scalar_lea.sflag [#allocation3], 1
    %772 = vsyncpa %s771, 1
    %773 = vsyncpa [#allocation6], 1
    %s774 = scalar_lea.sflag [#allocation6], 1
    %775 = vsyncpa %s774, 1
    %776 = vsyncpa [#allocation4], 1
    %s777 = scalar_lea.sflag [#allocation4], 1
    %778 = vsyncpa %s777, 1

</llo_original>
